<compile_context>
chip_gen: v7x
topology: tpu7x:2x2x1
jax: 0.10.0
libtpu: 0.0.40
codegen_flags: <defaults>
</compile_context>

<pallas_src>
import functools

import jax
import jax.numpy as jnp
from jax.experimental import pallas as pl
from jax.experimental.pallas import tpu as pltpu


def _pixel_shuffle_kernel(x_ref, o_ref, *, scale):
    # x_ref: (scale*scale, oc_blk, h_blk, W)   (batch dim squeezed by BlockSpec)
    # o_ref: (oc_blk, h_blk*scale, W*scale)
    _, oc_blk, h, w = x_ref.shape
    wout = w * scale
    dt = x_ref.dtype

    use_mxu = jnp.issubdtype(dt, jnp.floating)

    if use_mxu:
        # Hoisted one-hot column-interleave matrices (built once, not per r):
        #   C_q[j, j*scale + q] = 1
        row_idx = jax.lax.broadcasted_iota(jnp.int32, (w, wout), 0)
        col_idx = jax.lax.broadcasted_iota(jnp.int32, (w, wout), 1)
        base = row_idx * scale
        c_mats = [(col_idx == base + q).astype(dt) for q in range(scale)]

        if jnp.dtype(dt).itemsize >= 4:
            # f32 inputs: HIGHEST keeps the permutation matmul bit-exact.
            prec = jax.lax.Precision.HIGHEST
            acc_dtype = jnp.float32
        else:
            # bf16/f16: one DEFAULT-precision pass is already exact for one-hot
            # selection; accumulate in the native dtype (disjoint columns -> exact).
            prec = jax.lax.Precision.DEFAULT
            acc_dtype = dt

    # Flattening (oc_blk, h, w) -> (oc_blk*h, w) is free only when h is a multiple
    # of the dtype's sublane packing (8 for f32, 16 for bf16, 32 for int8/fp8).
    fold_oc = (h % (32 // jnp.dtype(dt).itemsize)) == 0

    for r in range(scale):
        if use_mxu:
            acc = None
            for q in range(scale):
                slab = x_ref[r * scale + q]                  # (oc_blk, h, w)
                c_q = c_mats[q]                              # (w, wout), exact 0/1
                if fold_oc:
                    lhs = slab.reshape(oc_blk * h, w)
                    term = jax.lax.dot_general(
                        lhs, c_q,
                        dimension_numbers=(((1,), (0,)), ((), ())),
                        precision=prec,
                        preferred_element_type=acc_dtype)    # (oc_blk*h, wout)
                else:
                    term = jax.lax.dot_general(
                        slab, c_q,
                        dimension_numbers=(((2,), (0,)), ((), ())),
                        precision=prec,
                        preferred_element_type=acc_dtype)    # (oc_blk, h, wout)
                # Different q hit disjoint output columns -> adding them is exact.
                acc = term if acc is None else acc + term
            out_rows = acc.reshape(oc_blk, h, wout).astype(o_ref.dtype)
        else:
            # Integer / other dtypes: pure data-movement lane interleave (no MXU,
            # which has no int datapath on v7x).
            # TODO(synk): replace with a lane-strided store once its Mosaic lowering
            # is verified on all generations.
            slabs = [x_ref[r * scale + q] for q in range(scale)]
            out_rows = jnp.stack(slabs, axis=-1).reshape(oc_blk, h, wout)

        # Row interleave: rows r, r+scale, ... == sublane scatter with stride=scale.
        o_ref[:, pl.ds(r, h, stride=scale), :] = out_rows


def _block_bytes(oc_blk, h_blk, *, s2, w, scale, itemsize):
    """Per-grid-step VMEM footprint: input block, output block, in-kernel temps."""
    wout = w * scale
    in_b = s2 * oc_blk * h_blk * w * itemsize
    out_b = oc_blk * (h_blk * scale) * wout * itemsize
    # f32 term + acc per r, plus the hoisted one-hot matrices.
    extra_b = 2 * oc_blk * h_blk * wout * 4 + scale * w * wout * itemsize
    return in_b, out_b, extra_b


def _pick_blocks(oc, h, *, s2, w, scale, itemsize, budget):
    """Largest (oc_blk, h_blk) tile whose footprint stays under `budget`."""
    h_cands = sorted({d for d in range(8, h + 1, 8) if h % d == 0} | {h})
    oc_cands = [d for d in range(1, oc + 1) if oc % d == 0]
    best = None       # largest total under budget
    smallest = None   # absolute smallest (last resort)
    for hb in h_cands:
        for ob in oc_cands:
            ib, outb, eb = _block_bytes(ob, hb, s2=s2, w=w, scale=scale,
                                        itemsize=itemsize)
            tot = ib + outb + eb
            if smallest is None or tot < smallest[0]:
                smallest = (tot, ob, hb)
            if tot <= budget and (best is None or tot > best[0]):
                best = (tot, ob, hb)
    chosen = best if best is not None else smallest
    return chosen[1], chosen[2]


def _vmem_capacity_bytes():
    try:
        return int(pltpu.get_tpu_info().vmem_capacity_bytes)
    except Exception:
        return 64 << 20  # conservative: v7x per-TensorCore VMEM


def pixel_shuffle(x, scale):
    b, c, h, w = x.shape
    s2 = scale * scale
    assert c % s2 == 0, "channels must be divisible by scale**2"
    oc = c // s2
    hout, wout = h * scale, w * scale
    itemsize = jnp.dtype(x.dtype).itemsize

    # Generation-aware tile budget / VMEM cap.
    vmem_cap = _vmem_capacity_bytes()
    if vmem_cap <= (64 << 20):            # v7x-class: 64 MiB per TensorCore
        budget, cap = 5 << 20, 48 << 20
    else:                                 # v5e / v6e: 128 MiB physical
        budget, cap = 12 << 20, 96 << 20

    oc_blk, h_blk = _pick_blocks(oc, h, s2=s2, w=w, scale=scale,
                                 itemsize=itemsize, budget=budget)
    n_oc, n_h = oc // oc_blk, h // h_blk

    in_b, out_b, extra_b = _block_bytes(oc_blk, h_blk, s2=s2, w=w, scale=scale,
                                        itemsize=itemsize)
    # Double-buffered pipeline blocks + in-kernel temporaries + headroom.
    vmem_limit = int(min(cap, 2 * (in_b + out_b) + extra_b + (4 << 20)))
    vmem_limit = max(vmem_limit, 8 << 20)

    # Free, contiguous split of the channel dim: c -> (scale*scale, oc).
    x5 = x.reshape(b, s2, oc, h, w)

    kernel = functools.partial(_pixel_shuffle_kernel, scale=scale)

    return pl.pallas_call(
        kernel,
        out_shape=jax.ShapeDtypeStruct((b, oc, hout, wout), x.dtype),
        grid=(b, n_oc, n_h),
        in_specs=[
            pl.BlockSpec((None, s2, oc_blk, h_blk, w),
                         lambda bi, oi, hi: (bi, 0, oi, hi, 0)),
        ],
        out_specs=pl.BlockSpec((None, oc_blk, h_blk * scale, wout),
                               lambda bi, oi, hi: (bi, oi, hi, 0)),
        compiler_params=pltpu.CompilerParams(
            dimension_semantics=("parallel", "parallel", "parallel"),
            vmem_limit_bytes=vmem_limit,
        ),
        cost_estimate=pl.CostEstimate(
            flops=0,
            transcendentals=0,
            bytes_accessed=2 * x.size * itemsize,
        ),
    )(x5)


def pixel_shuffle_ref(x, scale):
    """Pure-JAX reference reproducing the PyTorch module exactly."""
    b, c, h, w = x.shape
    oc = c // (scale * scale)
    y = x.reshape(b, scale, scale, oc, h, w)
    y = jnp.transpose(y, (0, 3, 4, 1, 5, 2))
    return y.reshape(b, oc, h * scale, w * scale)


if __name__ == "__main__":
    scale = 2
    b, c, h, w = 2, 8, 16, 16  # oc = 8 / 4 = 2
    key = jax.random.PRNGKey(0)
    x = jax.random.normal(key, (b, c, h, w), dtype=jnp.float32)

    out = jax.block_until_ready(pixel_shuffle(x, scale))

    ref = pixel_shuffle_ref(x, scale)
    assert out.shape == (b, c // (scale * scale), h * scale, w * scale)
    assert jnp.allclose(out, ref, atol=0.0, rtol=0.0), "mismatch vs reference"

    print("KERNEL_OK")
</pallas_src>

<mosaic_0001>
module attributes {stable_mosaic.version = 11 : i64} {
  func.func @_pixel_shuffle_kernel(%arg0: i32, %arg1: i32, %arg2: i32, %arg3: memref<1x4x2x16x16xf32, #tpu.memory_space<vmem>>, %arg4: memref<1x2x32x32xf32, #tpu.memory_space<vmem>>) attributes {dimension_semantics = [#tpu.dimension_semantics<parallel>, #tpu.dimension_semantics<parallel>, #tpu.dimension_semantics<parallel>], iteration_bounds = array<i64: 2, 1, 1>, scalar_prefetch = 0 : i64, scratch_operands = 0 : i64, tpu.core_type = #tpu.core_type<tc>, window_params = [{transform_indices = @transform_0, window_bounds = array<i64: 1, 4, 2, 16, 16>}, {transform_indices = @transform_1, window_bounds = array<i64: 1, 2, 32, 32>}]} {
    %0 = tpu.iota {dimensions = array<i32: 0>} : vector<16x32xi32>
    %1 = tpu.iota {dimensions = array<i32: 1>} : vector<16x32xi32>
    %c2_i32 = arith.constant 2 : i32
    %2 = vector.broadcast %c2_i32 : i32 to vector<16x32xi32>
    %3 = arith.muli %0, %2 : vector<16x32xi32>
    %c0_i32 = arith.constant 0 : i32
    %4 = vector.broadcast %c0_i32 : i32 to vector<16x32xi32>
    %5 = arith.addi %3, %4 : vector<16x32xi32>
    %6 = arith.cmpi eq, %1, %5 : vector<16x32xi32>
    %7 = arith.extui %6 : vector<16x32xi1> to vector<16x32xi32>
    %8 = arith.sitofp %7 : vector<16x32xi32> to vector<16x32xf32>
    %c1_i32 = arith.constant 1 : i32
    %9 = vector.broadcast %c1_i32 : i32 to vector<16x32xi32>
    %10 = arith.addi %3, %9 : vector<16x32xi32>
    %11 = arith.cmpi eq, %1, %10 : vector<16x32xi32>
    %12 = arith.extui %11 : vector<16x32xi1> to vector<16x32xi32>
    %13 = arith.sitofp %12 : vector<16x32xi32> to vector<16x32xf32>
    %c0 = arith.constant 0 : index
    %c0_0 = arith.constant 0 : index
    %c0_1 = arith.constant 0 : index
    %c0_2 = arith.constant 0 : index
    %c0_3 = arith.constant 0 : index
    %14 = vector.load %arg3[%c0, %c0_0, %c0_1, %c0_2, %c0_3] : memref<1x4x2x16x16xf32, #tpu.memory_space<vmem>>, vector<1x1x2x16x16xf32>
    %15 = vector.shape_cast %14 : vector<1x1x2x16x16xf32> to vector<2x16x16xf32>
    %16 = vector.shape_cast %15 : vector<2x16x16xf32> to vector<32x16xf32>
    %cst = arith.constant dense<0.000000e+00> : vector<32x32xf32>
    %17 = tpu.matmul %16, %8, %cst {dimension_numbers = #tpu.dot_dimension_numbers<[1], [0], [0], [1], [0, 0, 1, 1], [], []>, precision = #tpu.contract_precision<fp32>} : vector<32x16xf32>, vector<16x32xf32>, vector<32x32xf32> -> vector<32x32xf32>
    %c0_4 = arith.constant 0 : index
    %c1 = arith.constant 1 : index
    %c0_5 = arith.constant 0 : index
    %c0_6 = arith.constant 0 : index
    %c0_7 = arith.constant 0 : index
    %18 = vector.load %arg3[%c0_4, %c1, %c0_5, %c0_6, %c0_7] : memref<1x4x2x16x16xf32, #tpu.memory_space<vmem>>, vector<1x1x2x16x16xf32>
    %19 = vector.shape_cast %18 : vector<1x1x2x16x16xf32> to vector<2x16x16xf32>
    %20 = vector.shape_cast %19 : vector<2x16x16xf32> to vector<32x16xf32>
    %cst_8 = arith.constant dense<0.000000e+00> : vector<32x32xf32>
    %21 = tpu.matmul %20, %13, %cst_8 {dimension_numbers = #tpu.dot_dimension_numbers<[1], [0], [0], [1], [0, 0, 1, 1], [], []>, precision = #tpu.contract_precision<fp32>} : vector<32x16xf32>, vector<16x32xf32>, vector<32x32xf32> -> vector<32x32xf32>
    %22 = arith.addf %17, %21 : vector<32x32xf32>
    %23 = vector.shape_cast %22 : vector<32x32xf32> to vector<2x16x32xf32>
    %c0_9 = arith.constant 0 : index
    %c0_10 = arith.constant 0 : index
    %c0_11 = arith.constant 0 : index
    %c0_12 = arith.constant 0 : index
    %24 = tpu.strided_load %arg4[%c0_9, %c0_10, %c0_11, %c0_12] {strides = array<i32: 1, 1, 2, 1>} : memref<1x2x32x32xf32, #tpu.memory_space<vmem>>, vector<1x2x16x32xf32>
    %25 = vector.shape_cast %24 : vector<1x2x16x32xf32> to vector<2x16x32xf32>
    %26 = vector.shape_cast %23 : vector<2x16x32xf32> to vector<1x2x16x32xf32>
    tpu.strided_store %arg4[%c0_9, %c0_10, %c0_11, %c0_12], %26 {strides = array<i32: 1, 1, 2, 1>} : memref<1x2x32x32xf32, #tpu.memory_space<vmem>>, vector<1x2x16x32xf32>
    %c0_13 = arith.constant 0 : index
    %c2 = arith.constant 2 : index
    %c0_14 = arith.constant 0 : index
    %c0_15 = arith.constant 0 : index
    %c0_16 = arith.constant 0 : index
    %27 = vector.load %arg3[%c0_13, %c2, %c0_14, %c0_15, %c0_16] : memref<1x4x2x16x16xf32, #tpu.memory_space<vmem>>, vector<1x1x2x16x16xf32>
    %28 = vector.shape_cast %27 : vector<1x1x2x16x16xf32> to vector<2x16x16xf32>
    %29 = vector.shape_cast %28 : vector<2x16x16xf32> to vector<32x16xf32>
    %cst_17 = arith.constant dense<0.000000e+00> : vector<32x32xf32>
    %30 = tpu.matmul %29, %8, %cst_17 {dimension_numbers = #tpu.dot_dimension_numbers<[1], [0], [0], [1], [0, 0, 1, 1], [], []>, precision = #tpu.contract_precision<fp32>} : vector<32x16xf32>, vector<16x32xf32>, vector<32x32xf32> -> vector<32x32xf32>
    %c0_18 = arith.constant 0 : index
    %c3 = arith.constant 3 : index
    %c0_19 = arith.constant 0 : index
    %c0_20 = arith.constant 0 : index
    %c0_21 = arith.constant 0 : index
    %31 = vector.load %arg3[%c0_18, %c3, %c0_19, %c0_20, %c0_21] : memref<1x4x2x16x16xf32, #tpu.memory_space<vmem>>, vector<1x1x2x16x16xf32>
    %32 = vector.shape_cast %31 : vector<1x1x2x16x16xf32> to vector<2x16x16xf32>
    %33 = vector.shape_cast %32 : vector<2x16x16xf32> to vector<32x16xf32>
    %cst_22 = arith.constant dense<0.000000e+00> : vector<32x32xf32>
    %34 = tpu.matmul %33, %13, %cst_22 {dimension_numbers = #tpu.dot_dimension_numbers<[1], [0], [0], [1], [0, 0, 1, 1], [], []>, precision = #tpu.contract_precision<fp32>} : vector<32x16xf32>, vector<16x32xf32>, vector<32x32xf32> -> vector<32x32xf32>
    %35 = arith.addf %30, %34 : vector<32x32xf32>
    %36 = vector.shape_cast %35 : vector<32x32xf32> to vector<2x16x32xf32>
    %c0_23 = arith.constant 0 : index
    %c0_24 = arith.constant 0 : index
    %c1_25 = arith.constant 1 : index
    %c0_26 = arith.constant 0 : index
    %37 = tpu.strided_load %arg4[%c0_23, %c0_24, %c1_25, %c0_26] {strides = array<i32: 1, 1, 2, 1>} : memref<1x2x32x32xf32, #tpu.memory_space<vmem>>, vector<1x2x16x32xf32>
    %38 = vector.shape_cast %37 : vector<1x2x16x32xf32> to vector<2x16x32xf32>
    %39 = vector.shape_cast %36 : vector<2x16x32xf32> to vector<1x2x16x32xf32>
    tpu.strided_store %arg4[%c0_23, %c0_24, %c1_25, %c0_26], %39 {strides = array<i32: 1, 1, 2, 1>} : memref<1x2x32x32xf32, #tpu.memory_space<vmem>>, vector<1x2x16x32xf32>
    return
  }
  func.func @transform_0(%arg0: i32, %arg1: i32, %arg2: i32) -> (i32, i32, i32, i32, i32) {
    %c0_i32 = arith.constant 0 : i32
    %c0_i32_0 = arith.constant 0 : i32
    %c0_i32_1 = arith.constant 0 : i32
    return %arg0, %c0_i32, %arg1, %arg2, %c0_i32_0 : i32, i32, i32, i32, i32
  }
  func.func @transform_1(%arg0: i32, %arg1: i32, %arg2: i32) -> (i32, i32, i32, i32) {
    %c0_i32 = arith.constant 0 : i32
    %c0_i32_0 = arith.constant 0 : i32
    return %arg0, %arg1, %arg2, %c0_i32 : i32, i32, i32, i32
  }
}

</mosaic_0001>

<llo_original>
// kernel: tpu_custom_call.1
$region0: #{tpu_custom_call.1}
  #allocation0 [shape = 'u32[]', space=smem, size = 0x4, offset = 0x4, fixed_abs, tag = 'smem constant byte address 0x4 - core index']
  #allocation1 [shape = 'u32[144,128]{1,0:T(1,128)}', space=vmem, size = 0x12000, scoped, tag = 'internal scratch']
  %s0 = inlined_call_operand.hbm [shape: f32[2,4,2,16,16], index: 0, kind: input, shape index: {}]
  %s1 = inlined_call_operand.hbm [shape: f32[2,2,32,32], index: 1, kind: output, shape index: {}]
  %s2 = sld [smem:[#allocation0]]
  $region41: #{tpu_custom_call.1} parent=0
    _
  %s4 = ssub.s32 1, %s2
  %s5 = scalar_select 0, %s4, %s2
  $region1: #{tpu_custom_call.1} parent=0
    #allocation2 [shape = 'u8[131072]{0}', space=vmem, size = 0x20000, scoped, tag = 'input window, operand 0']
    #allocation3 [shape = 's32[2]{0}', space=sflag, size = 0x8, scoped, tag = 'scoped memory for tpu_custom_call.1']
    #allocation4 [shape = 's32[2]{0}', space=sflag, size = 0x8, scoped, tag = 'scoped memory for tpu_custom_call.1']
    #allocation5 [shape = 'u8[65536]{0}', space=vmem, size = 0x10000, scoped, tag = 'output window, operand 0']
    %6 = vsyncpa [#allocation3], 0
    %s7 = scalar_lea.sflag [#allocation3], 1
    %8 = vsyncpa %s7, 0
    %9 = vsyncpa [#allocation4], 0
    %s10 = scalar_lea.sflag [#allocation4], 1
    %11 = vsyncpa %s10, 0
    loop: start=0, step=1, limit=4
    $region2: #{tpu_custom_call.1} parent=1 // loop_pre_header
      _
    $region3: #{tpu_custom_call.1} parent=1 // loop_header
      %s13 = sphi 0, %s17
      %p14 = scmp.ge.s32.totalorder %s13, 4
      %s20 = sphi 0, %s39
      %s21 = sphi 0, %s35
      %s22 = sphi 0, %s31
      %s23 = sphi 0, %s20
      %s24 = sphi 0, %s21
      %s25 = sphi 0, %s22
      %s26 = sphi 0, %s23
      %s27 = sphi 0, %s24
      %s28 = sphi 0, %s25
      %s46 = sphi 0, %s48
      %s49 = sphi 0, %s46
      %s50 = sphi 0, %s49
      %s66 = sphi 0, %s50
      %s76 = sphi 0, %s78
      %s79 = sphi 0, %s76
      %s80 = sphi 0, %s79
      %s96 = sphi 0, %s80
    $region4: #{tpu_custom_call.1} parent=1 // loop_header_branch
      %16 = sbr.rel (%p14) target = $region8
    $region5: #{tpu_custom_call.1} parent=1 // loop_body
      %s18 = ssub.s32 %s13, 1
      %s19 = ssub.s32 %s13, 2
      %s29 = sadd.s32 1, %s22
      %p30 = scmp.ge.s32.totalorder %s29, 1
      %s31 = scalar_select %p30, 0, %s29
      %s32 = sadd.s32 1, %s21
      %s33 = scalar_select %p30, %s32, %s21
      %p34 = scmp.ge.s32.totalorder %s33, 1
      %s35 = scalar_select %p34, 0, %s33
      %s36 = sadd.s32 1, %s20
      %s37 = scalar_select %p34, %s36, %s20
      %p38 = scmp.ge.s32.totalorder %s37, 2
      %s39 = scalar_select %p38, 0, %s37
      %s40 = ssub.s32 %s20, %s39
      %s41 = ssub.s32 %s21, %s35
      %s42 = sor.u32 %s40, %s41
      %s43 = ssub.s32 %s22, %s31
      %s44 = sor.u32 %s42, %s43
      %p45 = scmp.eq.s32.totalorder %s44, 0
      %s47 = sadd.s32 %s46, 1
      %s48 = scalar_select %p45, %s46, %s47
      %p51 = pneg %p45
      %p52 = scmp.eq.s32.totalorder %s13, 1
      %p53 = por %p51, %p52
      %p54 = scmp.ne.s32.totalorder %s46, %s49
      %p55 = scmp.eq.s32.totalorder %s13, 0
      %p56 = por %p54, %p55
      %p57 = scmp.ne.s32.totalorder %s46, %s49
      %p58 = scmp.eq.s32.totalorder %s18, 1
      %p59 = por %p57, %p58
      %p60 = scmp.ne.s32.totalorder %s49, %s50
      %p61 = scmp.eq.s32.totalorder %s18, 0
      %p62 = por %p60, %p61
      %p63 = scmp.ne.s32.totalorder %s49, %s50
      %p64 = scmp.eq.s32.totalorder %s19, 1
      %p65 = por %p63, %p64
      %p67 = scmp.ne.s32.totalorder %s50, %s66
      %p68 = scmp.eq.s32.totalorder %s19, 0
      %p69 = por %p67, %p68
      %s70 = ssub.s32 %s20, %s39
      %s71 = ssub.s32 %s21, %s35
      %s72 = sor.u32 %s70, %s71
      %s73 = ssub.s32 %s22, %s31
      %s74 = sor.u32 %s72, %s73
      %p75 = scmp.eq.s32.totalorder %s74, 0
      %s77 = sadd.s32 %s76, 1
      %s78 = scalar_select %p75, %s76, %s77
      %p81 = pneg %p75
      %p82 = scmp.eq.s32.totalorder %s13, 1
      %p83 = por %p81, %p82
      %p84 = scmp.ne.s32.totalorder %s76, %s79
      %p85 = scmp.eq.s32.totalorder %s13, 0
      %p86 = por %p84, %p85
      %p87 = scmp.ne.s32.totalorder %s76, %s79
      %p88 = scmp.eq.s32.totalorder %s18, 1
      %p89 = por %p87, %p88
      %p90 = scmp.ne.s32.totalorder %s79, %s80
      %p91 = scmp.eq.s32.totalorder %s18, 0
      %p92 = por %p90, %p91
      %p93 = scmp.ne.s32.totalorder %s79, %s80
      %p94 = scmp.eq.s32.totalorder %s19, 1
      %p95 = por %p93, %p94
      %p97 = scmp.ne.s32.totalorder %s80, %s96
      %p98 = scmp.eq.s32.totalorder %s19, 0
      %p99 = por %p97, %p98
      %p100 = scmp.le.s32.totalorder 1, %s13
      %p101 = scmp.lt.s32.totalorder %s13, 3
      %p102 = pnand %p100, %p101
      %p103 = pneg %p102
      // Predicated region
      $region9: #{tpu_custom_call.1} parent=5 // pred_check
        _
      $region10: #{tpu_custom_call.1} parent=5 // pred_check_branch
        %105 = sbr.rel (%p102) target = $region12
      $region11: #{tpu_custom_call.1} parent=5 // pred_region
        %s106 = ssub.s32 %s13, 1
      $region12: #{tpu_custom_call.1} parent=5 // pred_fallthru
        _
      %p107 = scmp.lt.s32.totalorder %s13, 2
      // Predicated region
      $region13: #{tpu_custom_call.1} parent=5 // pred_check
        %p108 = pneg %p107
      $region14: #{tpu_custom_call.1} parent=5 // pred_check_branch
        %110 = sbr.rel (%p108) target = $region16
      $region15: #{tpu_custom_call.1} parent=5 // pred_region
        // Predicated region
        $region17: #{tpu_custom_call.1} parent=15 // pred_check
          %p111 = pneg %p56
        $region18: #{tpu_custom_call.1} parent=15 // pred_check_branch
          %113 = sbr.rel (%p111) target = $region20
        $region19: #{tpu_custom_call.1} parent=15 // pred_region
          %s114 = sand.u32 %s46, 1
          %s115 = scalar_lea.sflag [#allocation3], %s114
          %s116 = sand.u32 %s46, 1
          %s117 = smul.addr %s116, 128
          %s118 = scalar_lea.vmem [#allocation2], %s117
          %s119 = smul.u32 2, %s21
          %s120 = smul.u32 2, %s22
          %s122 = ssub.s32 2048, 2048
          %123 = vsyncadd %s115, %s122
          %s124 = smul.addr %s119, 2
          %s125 = sadd.s32 %s120, %s124
          %s126 = smul.addr %s20, 16
          %s127 = sadd.s32 %s125, %s126
          %s128 = smul.addr %s127, 128
          %s129 = scalar_lea.hbm %s0, %s128
          %s130 = sshll.u32 %s118, 4
          %s131 = int_to_ptr.vmem [resolvable:$true] %s130
          %136 = dma.hbm_to_vmem [thread:$0]  %s129, 2048, %s131, %s115, 128, 128, 8
        $region20: #{tpu_custom_call.1} parent=15 // pred_fallthru
          _
      $region16: #{tpu_custom_call.1} parent=5 // pred_fallthru
        _
      %p137 = scmp.le.s32.totalorder 1, %s13
      %p138 = scmp.lt.s32.totalorder %s13, 3
      %p139 = pnand %p137, %p138
      %p140 = pneg %p139
      // Predicated region
      $region21: #{tpu_custom_call.1} parent=5 // pred_check
        _
      $region22: #{tpu_custom_call.1} parent=5 // pred_check_branch
        %142 = sbr.rel (%p139) target = $region24
      $region23: #{tpu_custom_call.1} parent=5 // pred_region
        %s143 = ssub.s32 %s13, 1
        %s144 = sand.u32 %s49, 1
        %s145 = scalar_lea.sflag [#allocation3], %s144
        %s146 = sand.u32 %s49, 1
        %s147 = smul.addr %s146, 128
        %s148 = scalar_lea.vmem [#allocation2], %s147
        // Predicated region
        $region25: #{tpu_custom_call.1} parent=23 // pred_check
          %p149 = pneg %p62
        $region26: #{tpu_custom_call.1} parent=23 // pred_check_branch
          %151 = sbr.rel (%p149) target = $region28
        $region27: #{tpu_custom_call.1} parent=23 // pred_region
          %152 = dma.done %s145, 2048
        $region28: #{tpu_custom_call.1} parent=23 // pred_fallthru
          _
        %s153 = sand.u32 %s49, 1
        %s154 = scalar_lea.sflag [#allocation3], %s153
        %s155 = sand.u32 %s49, 1
        %s156 = smul.addr %s155, 128
        %s157 = scalar_lea.vmem [#allocation2], %s156
        %p158 = pneg %p62
        %p159 = pneg %p59
        %p160 = pneg %p92
        %p161 = pneg %p89
        %s162 = sand.u32 %s79, 1
        %s163 = scalar_lea.sflag [#allocation4], %s162
        %s164 = sand.u32 %s79, 1
        %s165 = smul.addr %s164, 64
        %s166 = scalar_lea.vmem [#allocation5], %s165
        %s167 = smul.u32 2, %s24
        %s168 = smul.u32 2, %s25
        %s169 = smul.u32 2, %s24
        %s170 = smul.u32 4, %s25
        %v171 = vlaneseq
        %v172 = vshrl.u32 %v171, 7
        %v173 = vadd.s32 %v172, 8
        %v174 = vlaneseq
        %v175 = vand.u32 %v174, 127
        %v176 = vmul.u32 %v172, 2
        %v177 = vmul.u32 %v173, 2
        %vm178 = vcmp.eq.s32.totalorder %v175, %v176
        %vm179 = vcmp.eq.s32.totalorder %v175, %v177
        %v180 = vsel %vm178, 1, 0
        %v181 = vsel %vm179, 1, 0
        %v182 = vcvt.s32.f32 %v180
        %v183 = vcvt.s32.f32 %v181
        %v184 = vadd.s32 %v176, 1
        %v185 = vadd.s32 %v177, 1
        %vm186 = vcmp.eq.s32.totalorder %v175, %v184
        %vm187 = vcmp.eq.s32.totalorder %v175, %v185
        %v188 = vsel %vm186, 1, 0
        %v189 = vsel %vm187, 1, 0
        %v190 = vcvt.s32.f32 %v188
        %v191 = vcvt.s32.f32 %v189
        %v192 = vld [vmem:[%s148] sm:$0xff]
        %v193 = vld [vmem:[%s148 + $0x8] sm:$0xff]
        %v194 = vld [vmem:[%s148 + $0x10] sm:$0xff]
        %v195 = vld [vmem:[%s148 + $0x18] sm:$0xff]
        %s196 = scalar_lea.vmem %s148, 32 [#allocation2]
        %v197 = vld [vmem:[%s196] sm:$0xff]
        %v198 = vld [vmem:[%s196 + $0x8] sm:$0xff]
        %v199 = vld [vmem:[%s196 + $0x10] sm:$0xff]
        %v200 = vld [vmem:[%s196 + $0x18] sm:$0xff]
        %vm201 = vcmask 130048
        %v203 = vsel %vm201, %v197, 0
        %v206 = vsel %vm201, %v198, 0
        %v209 = vsel %vm201, %v199, 0
        %v212 = vsel %vm201, %v200, 0
        %214 = vmatprep.subr.mxu0 0.0
        %v215 = vand.u32 %v190, 4294901760
        %216 = vmatpush1.msra.mxu0 %v215
        %217 = vmatprep.subr.mxu0 0.0
        %v218 = vand.u32 %v191, 4294901760
        %219 = vmatpush1.msra.mxu0 %v218
        %220 = vmatprep.subr.mxu0 0.0
        %221 = vmatpush1.msra.mxu0 0.0
        %222 = vmatprep.subr.mxu0 0.0
        %223 = vmatpush1.msra.mxu0 0.0
        %224 = vmatprep.subr.mxu0 0.0
        %225 = vmatpush1.msra.mxu0 0.0
        %226 = vmatprep.subr.mxu0 0.0
        %227 = vmatpush1.msra.mxu0 0.0
        %228 = vmatprep.subr.mxu0 0.0
        %229 = vmatpush1.msra.mxu0 0.0
        %230 = vmatprep.subr.mxu0 0.0
        %231 = vmatpush1.msra.mxu0 0.0
        %232 = vmatprep.subr.mxu0 0.0
        %233 = vmatpush1.msra.mxu0 0.0
        %234 = vmatprep.subr.mxu0 0.0
        %235 = vmatpush1.msra.mxu0 0.0
        %236 = vmatprep.subr.mxu0 0.0
        %237 = vmatpush1.msra.mxu0 0.0
        %238 = vmatprep.subr.mxu0 0.0
        %239 = vmatpush1.msra.mxu0 0.0
        %240 = vmatprep.subr.mxu0 0.0
        %241 = vmatpush1.msra.mxu0 0.0
        %242 = vmatprep.subr.mxu0 0.0
        %243 = vmatpush1.msra.mxu0 0.0
        %244 = vmatprep.subr.mxu0 0.0
        %245 = vmatpush1.msra.mxu0 0.0
        %246 = vmatprep.subr.mxu0 0.0
        %247 = vmatpush1.msra.mxu0 0.0
        %248 = vmatprep.subr.mxu0 0.0
        %249 = vmatpush1.msra.mxu0 0.0
        %250 = vmatprep.subr.mxu0 0.0
        %251 = vmatpush1.msra.mxu0 0.0
        %252 = vmatprep.subr.mxu0 0.0
        %253 = vmatpush1.msra.mxu0 0.0
        %254 = vmatprep.subr.mxu0 0.0
        %255 = vmatpush1.msra.mxu0 0.0
        %256 = vmatprep.subr.mxu0 0.0
        %257 = vmatpush1.msra.mxu0 0.0
        %258 = vmatprep.subr.mxu0 0.0
        %259 = vmatpush1.msra.mxu0 0.0
        %260 = vmatprep.subr.mxu0 0.0
        %261 = vmatpush1.msra.mxu0 0.0
        %262 = vmatprep.subr.mxu0 0.0
        %263 = vmatpush1.msra.mxu0 0.0
        %264 = vmatprep.subr.mxu0 0.0
        %265 = vmatpush1.msra.mxu0 0.0
        %266 = vmatprep.subr.mxu0 0.0
        %267 = vmatpush1.msra.mxu0 0.0
        %268 = vmatprep.subr.mxu0 0.0
        %269 = vmatpush1.msra.mxu0 0.0
        %270 = vmatprep.subr.mxu0 0.0
        %271 = vmatpush1.msra.mxu0 0.0
        %272 = vmatprep.subr.mxu0 0.0
        %273 = vmatpush1.msra.mxu0 0.0
        %274 = vmatprep.subr.mxu0 0.0
        %275 = vmatpush1.msra.mxu0 0.0
        %276 = vmatprep.subr.mxu0 0.0
        %277 = vmatpush1.msra.mxu0 0.0
        %278 = vmatprep.subr.mxu0 0.0
        %279 = vmatpush1.msra.mxu0 0.0
        %280 = vmatprep.mubr.f32.mxu0 0.0
        %v281 = vand.u32 %v203, 4294901760
        %v282 = vsub.f32 %v203, %v281
        %v283 = vand.u32 %v282, 4294901760
        %v284 = vsub.f32 %v282, %v283
        %v285 = vand.u32 %v284, 4294901760
        %286 = vmatmul.mubr.f32.gmra.mrb[0].mxu0 %v285
        %v287 = vpop.f32.mrb[0].mxu0
        %v288 = vadd.f32 0.0, %v287
        %v289 = vpop.f32.mrb[0].mxu0
        %290 = vmatprep.mubr.f32.mxu0 0.0
        %v291 = vand.u32 %v206, 4294901760
        %v292 = vsub.f32 %v206, %v291
        %v293 = vand.u32 %v292, 4294901760
        %v294 = vsub.f32 %v292, %v293
        %v295 = vand.u32 %v294, 4294901760
        %296 = vmatmul.mubr.f32.gmra.mrb[0].mxu0 %v295
        %v297 = vpop.f32.mrb[0].mxu0
        %v298 = vadd.f32 0.0, %v297
        %v299 = vpop.f32.mrb[0].mxu0
        %300 = vmatprep.mubr.f32.mxu0 0.0
        %v301 = vand.u32 %v209, 4294901760
        %v302 = vsub.f32 %v209, %v301
        %v303 = vand.u32 %v302, 4294901760
        %v304 = vsub.f32 %v302, %v303
        %v305 = vand.u32 %v304, 4294901760
        %306 = vmatmul.mubr.f32.gmra.mrb[0].mxu0 %v305
        %v307 = vpop.f32.mrb[0].mxu0
        %v308 = vadd.f32 0.0, %v307
        %v309 = vpop.f32.mrb[0].mxu0
        %310 = vmatprep.mubr.f32.mxu0 0.0
        %v311 = vand.u32 %v212, 4294901760
        %v312 = vsub.f32 %v212, %v311
        %v313 = vand.u32 %v312, 4294901760
        %v314 = vsub.f32 %v312, %v313
        %v315 = vand.u32 %v314, 4294901760
        %316 = vmatmul.mubr.f32.gmra.mrb[0].mxu0 %v315
        %v317 = vpop.f32.mrb[0].mxu0
        %v318 = vadd.f32 0.0, %v317
        %v319 = vpop.f32.mrb[0].mxu0
        %320 = vdwg.mxu0
        %321 = vmatprep.subr.mxu0 0.0
        %v322 = vand.u32 %v190, 4294901760
        %v323 = vsub.f32 %v190, %v322
        %v324 = vand.u32 %v323, 4294901760
        %v325 = vsub.f32 %v323, %v324
        %v326 = vand.u32 %v325, 4294901760
        %327 = vmatpush1.msra.mxu0 %v326
        %328 = vmatprep.subr.mxu0 0.0
        %v329 = vand.u32 %v191, 4294901760
        %v330 = vsub.f32 %v191, %v329
        %v331 = vand.u32 %v330, 4294901760
        %v332 = vsub.f32 %v330, %v331
        %v333 = vand.u32 %v332, 4294901760
        %334 = vmatpush1.msra.mxu0 %v333
        %335 = vmatprep.subr.mxu0 0.0
        %336 = vmatpush1.msra.mxu0 0.0
        %337 = vmatprep.subr.mxu0 0.0
        %338 = vmatpush1.msra.mxu0 0.0
        %339 = vmatprep.subr.mxu0 0.0
        %340 = vmatpush1.msra.mxu0 0.0
        %341 = vmatprep.subr.mxu0 0.0
        %342 = vmatpush1.msra.mxu0 0.0
        %343 = vmatprep.subr.mxu0 0.0
        %344 = vmatpush1.msra.mxu0 0.0
        %345 = vmatprep.subr.mxu0 0.0
        %346 = vmatpush1.msra.mxu0 0.0
        %347 = vmatprep.subr.mxu0 0.0
        %348 = vmatpush1.msra.mxu0 0.0
        %349 = vmatprep.subr.mxu0 0.0
        %350 = vmatpush1.msra.mxu0 0.0
        %351 = vmatprep.subr.mxu0 0.0
        %352 = vmatpush1.msra.mxu0 0.0
        %353 = vmatprep.subr.mxu0 0.0
        %354 = vmatpush1.msra.mxu0 0.0
        %355 = vmatprep.subr.mxu0 0.0
        %356 = vmatpush1.msra.mxu0 0.0
        %357 = vmatprep.subr.mxu0 0.0
        %358 = vmatpush1.msra.mxu0 0.0
        %359 = vmatprep.subr.mxu0 0.0
        %360 = vmatpush1.msra.mxu0 0.0
        %361 = vmatprep.subr.mxu0 0.0
        %362 = vmatpush1.msra.mxu0 0.0
        %363 = vmatprep.subr.mxu0 0.0
        %364 = vmatpush1.msra.mxu0 0.0
        %365 = vmatprep.subr.mxu0 0.0
        %366 = vmatpush1.msra.mxu0 0.0
        %367 = vmatprep.subr.mxu0 0.0
        %368 = vmatpush1.msra.mxu0 0.0
        %369 = vmatprep.subr.mxu0 0.0
        %370 = vmatpush1.msra.mxu0 0.0
        %371 = vmatprep.subr.mxu0 0.0
        %372 = vmatpush1.msra.mxu0 0.0
        %373 = vmatprep.subr.mxu0 0.0
        %374 = vmatpush1.msra.mxu0 0.0
        %375 = vmatprep.subr.mxu0 0.0
        %376 = vmatpush1.msra.mxu0 0.0
        %377 = vmatprep.subr.mxu0 0.0
        %378 = vmatpush1.msra.mxu0 0.0
        %379 = vmatprep.subr.mxu0 0.0
        %380 = vmatpush1.msra.mxu0 0.0
        %381 = vmatprep.subr.mxu0 0.0
        %382 = vmatpush1.msra.mxu0 0.0
        %383 = vmatprep.subr.mxu0 0.0
        %384 = vmatpush1.msra.mxu0 0.0
        %385 = vmatprep.subr.mxu0 0.0
        %386 = vmatpush1.msra.mxu0 0.0
        %387 = vmatprep.subr.mxu0 0.0
        %388 = vmatpush1.msra.mxu0 0.0
        %389 = vmatprep.subr.mxu0 0.0
        %390 = vmatpush1.msra.mxu0 0.0
        %391 = vmatprep.subr.mxu0 0.0
        %392 = vmatpush1.msra.mxu0 0.0
        %393 = vmatprep.subr.mxu0 0.0
        %394 = vmatpush1.msra.mxu0 0.0
        %395 = vmatprep.mubr.f32.mxu0 0.0
        %v396 = vand.u32 %v203, 4294901760
        %397 = vmatmul.mubr.f32.gmra.mrb[0].mxu0 %v396
        %v398 = vpop.f32.mrb[0].mxu0
        %v399 = vadd.f32 %v288, %v398
        %v400 = vpop.f32.mrb[0].mxu0
        %401 = vmatprep.mubr.f32.mxu0 0.0
        %v402 = vand.u32 %v206, 4294901760
        %403 = vmatmul.mubr.f32.gmra.mrb[0].mxu0 %v402
        %v404 = vpop.f32.mrb[0].mxu0
        %v405 = vadd.f32 %v298, %v404
        %v406 = vpop.f32.mrb[0].mxu0
        %407 = vmatprep.mubr.f32.mxu0 0.0
        %v408 = vand.u32 %v209, 4294901760
        %409 = vmatmul.mubr.f32.gmra.mrb[0].mxu0 %v408
        %v410 = vpop.f32.mrb[0].mxu0
        %v411 = vadd.f32 %v308, %v410
        %v412 = vpop.f32.mrb[0].mxu0
        %413 = vmatprep.mubr.f32.mxu0 0.0
        %v414 = vand.u32 %v212, 4294901760
        %415 = vmatmul.mubr.f32.gmra.mrb[0].mxu0 %v414
        %v416 = vpop.f32.mrb[0].mxu0
        %v417 = vadd.f32 %v318, %v416
        %v418 = vpop.f32.mrb[0].mxu0
        %419 = vdwg.mxu0
        %420 = vmatprep.subr.mxu0 0.0
        %v421 = vand.u32 %v190, 4294901760
        %v422 = vsub.f32 %v190, %v421
        %423 = vmatpush1.msra.mxu0 %v422
        %424 = vmatprep.subr.mxu0 0.0
        %v425 = vand.u32 %v191, 4294901760
        %v426 = vsub.f32 %v191, %v425
        %427 = vmatpush1.msra.mxu0 %v426
        %428 = vmatprep.subr.mxu0 0.0
        %429 = vmatpush1.msra.mxu0 0.0
        %430 = vmatprep.subr.mxu0 0.0
        %431 = vmatpush1.msra.mxu0 0.0
        %432 = vmatprep.subr.mxu0 0.0
        %433 = vmatpush1.msra.mxu0 0.0
        %434 = vmatprep.subr.mxu0 0.0
        %435 = vmatpush1.msra.mxu0 0.0
        %436 = vmatprep.subr.mxu0 0.0
        %437 = vmatpush1.msra.mxu0 0.0
        %438 = vmatprep.subr.mxu0 0.0
        %439 = vmatpush1.msra.mxu0 0.0
        %440 = vmatprep.subr.mxu0 0.0
        %441 = vmatpush1.msra.mxu0 0.0
        %442 = vmatprep.subr.mxu0 0.0
        %443 = vmatpush1.msra.mxu0 0.0
        %444 = vmatprep.subr.mxu0 0.0
        %445 = vmatpush1.msra.mxu0 0.0
        %446 = vmatprep.subr.mxu0 0.0
        %447 = vmatpush1.msra.mxu0 0.0
        %448 = vmatprep.subr.mxu0 0.0
        %449 = vmatpush1.msra.mxu0 0.0
        %450 = vmatprep.subr.mxu0 0.0
        %451 = vmatpush1.msra.mxu0 0.0
        %452 = vmatprep.subr.mxu0 0.0
        %453 = vmatpush1.msra.mxu0 0.0
        %454 = vmatprep.subr.mxu0 0.0
        %455 = vmatpush1.msra.mxu0 0.0
        %456 = vmatprep.subr.mxu0 0.0
        %457 = vmatpush1.msra.mxu0 0.0
        %458 = vmatprep.subr.mxu0 0.0
        %459 = vmatpush1.msra.mxu0 0.0
        %460 = vmatprep.subr.mxu0 0.0
        %461 = vmatpush1.msra.mxu0 0.0
        %462 = vmatprep.subr.mxu0 0.0
        %463 = vmatpush1.msra.mxu0 0.0
        %464 = vmatprep.subr.mxu0 0.0
        %465 = vmatpush1.msra.mxu0 0.0
        %466 = vmatprep.subr.mxu0 0.0
        %467 = vmatpush1.msra.mxu0 0.0
        %468 = vmatprep.subr.mxu0 0.0
        %469 = vmatpush1.msra.mxu0 0.0
        %470 = vmatprep.subr.mxu0 0.0
        %471 = vmatpush1.msra.mxu0 0.0
        %472 = vmatprep.subr.mxu0 0.0
        %473 = vmatpush1.msra.mxu0 0.0
        %474 = vmatprep.subr.mxu0 0.0
        %475 = vmatpush1.msra.mxu0 0.0
        %476 = vmatprep.subr.mxu0 0.0
        %477 = vmatpush1.msra.mxu0 0.0
        %478 = vmatprep.subr.mxu0 0.0
        %479 = vmatpush1.msra.mxu0 0.0
        %480 = vmatprep.subr.mxu0 0.0
        %481 = vmatpush1.msra.mxu0 0.0
        %482 = vmatprep.subr.mxu0 0.0
        %483 = vmatpush1.msra.mxu0 0.0
        %484 = vmatprep.subr.mxu0 0.0
        %485 = vmatpush1.msra.mxu0 0.0
        %486 = vmatprep.subr.mxu0 0.0
        %487 = vmatpush1.msra.mxu0 0.0
        %488 = vmatprep.mubr.f32.mxu0 0.0
        %v489 = vand.u32 %v203, 4294901760
        %v490 = vsub.f32 %v203, %v489
        %491 = vmatmul.mubr.f32.gmra.mrb[0].mxu0 %v490
        %v492 = vpop.f32.mrb[0].mxu0
        %v493 = vadd.f32 %v399, %v492
        %v494 = vpop.f32.mrb[0].mxu0
        %495 = vmatprep.mubr.f32.mxu0 0.0
        %v496 = vand.u32 %v206, 4294901760
        %v497 = vsub.f32 %v206, %v496
        %498 = vmatmul.mubr.f32.gmra.mrb[0].mxu0 %v497
        %v499 = vpop.f32.mrb[0].mxu0
        %v500 = vadd.f32 %v405, %v499
        %v501 = vpop.f32.mrb[0].mxu0
        %502 = vmatprep.mubr.f32.mxu0 0.0
        %v503 = vand.u32 %v209, 4294901760
        %v504 = vsub.f32 %v209, %v503
        %505 = vmatmul.mubr.f32.gmra.mrb[0].mxu0 %v504
        %v506 = vpop.f32.mrb[0].mxu0
        %v507 = vadd.f32 %v411, %v506
        %v508 = vpop.f32.mrb[0].mxu0
        %509 = vmatprep.mubr.f32.mxu0 0.0
        %v510 = vand.u32 %v212, 4294901760
        %v511 = vsub.f32 %v212, %v510
        %512 = vmatmul.mubr.f32.gmra.mrb[0].mxu0 %v511
        %v513 = vpop.f32.mrb[0].mxu0
        %v514 = vadd.f32 %v417, %v513
        %v515 = vpop.f32.mrb[0].mxu0
        %516 = vdwg.mxu0
        %517 = vmatprep.subr.mxu0 0.0
        %v518 = vand.u32 %v190, 4294901760
        %519 = vmatpush1.msra.mxu0 %v518
        %520 = vmatprep.subr.mxu0 0.0
        %v521 = vand.u32 %v191, 4294901760
        %522 = vmatpush1.msra.mxu0 %v521
        %523 = vmatprep.subr.mxu0 0.0
        %524 = vmatpush1.msra.mxu0 0.0
        %525 = vmatprep.subr.mxu0 0.0
        %526 = vmatpush1.msra.mxu0 0.0
        %527 = vmatprep.subr.mxu0 0.0
        %528 = vmatpush1.msra.mxu0 0.0
        %529 = vmatprep.subr.mxu0 0.0
        %530 = vmatpush1.msra.mxu0 0.0
        %531 = vmatprep.subr.mxu0 0.0
        %532 = vmatpush1.msra.mxu0 0.0
        %533 = vmatprep.subr.mxu0 0.0
        %534 = vmatpush1.msra.mxu0 0.0
        %535 = vmatprep.subr.mxu0 0.0
        %536 = vmatpush1.msra.mxu0 0.0
        %537 = vmatprep.subr.mxu0 0.0
        %538 = vmatpush1.msra.mxu0 0.0
        %539 = vmatprep.subr.mxu0 0.0
        %540 = vmatpush1.msra.mxu0 0.0
        %541 = vmatprep.subr.mxu0 0.0
        %542 = vmatpush1.msra.mxu0 0.0
        %543 = vmatprep.subr.mxu0 0.0
        %544 = vmatpush1.msra.mxu0 0.0
        %545 = vmatprep.subr.mxu0 0.0
        %546 = vmatpush1.msra.mxu0 0.0
        %547 = vmatprep.subr.mxu0 0.0
        %548 = vmatpush1.msra.mxu0 0.0
        %549 = vmatprep.subr.mxu0 0.0
        %550 = vmatpush1.msra.mxu0 0.0
        %551 = vmatprep.subr.mxu0 0.0
        %552 = vmatpush1.msra.mxu0 0.0
        %553 = vmatprep.subr.mxu0 0.0
        %554 = vmatpush1.msra.mxu0 0.0
        %555 = vmatprep.subr.mxu0 0.0
        %556 = vmatpush1.msra.mxu0 0.0
        %557 = vmatprep.subr.mxu0 0.0
        %558 = vmatpush1.msra.mxu0 0.0
        %559 = vmatprep.subr.mxu0 0.0
        %560 = vmatpush1.msra.mxu0 0.0
        %561 = vmatprep.subr.mxu0 0.0
        %562 = vmatpush1.msra.mxu0 0.0
        %563 = vmatprep.subr.mxu0 0.0
        %564 = vmatpush1.msra.mxu0 0.0
        %565 = vmatprep.subr.mxu0 0.0
        %566 = vmatpush1.msra.mxu0 0.0
        %567 = vmatprep.subr.mxu0 0.0
        %568 = vmatpush1.msra.mxu0 0.0
        %569 = vmatprep.subr.mxu0 0.0
        %570 = vmatpush1.msra.mxu0 0.0
        %571 = vmatprep.subr.mxu0 0.0
        %572 = vmatpush1.msra.mxu0 0.0
        %573 = vmatprep.subr.mxu0 0.0
        %574 = vmatpush1.msra.mxu0 0.0
        %575 = vmatprep.subr.mxu0 0.0
        %576 = vmatpush1.msra.mxu0 0.0
        %577 = vmatprep.subr.mxu0 0.0
        %578 = vmatpush1.msra.mxu0 0.0
        %579 = vmatprep.subr.mxu0 0.0
        %580 = vmatpush1.msra.mxu0 0.0
        %581 = vmatprep.subr.mxu0 0.0
        %582 = vmatpush1.msra.mxu0 0.0
        %583 = vmatprep.mubr.f32.mxu0 0.0
        %v584 = vand.u32 %v203, 4294901760
        %v585 = vsub.f32 %v203, %v584
        %v586 = vand.u32 %v585, 4294901760
        %587 = vmatmul.mubr.f32.gmra.mrb[0].mxu0 %v586
        %v588 = vpop.f32.mrb[0].mxu0
        %v589 = vadd.f32 %v493, %v588
        %v590 = vpop.f32.mrb[0].mxu0
        %591 = vmatprep.mubr.f32.mxu0 0.0
        %v592 = vand.u32 %v206, 4294901760
        %v593 = vsub.f32 %v206, %v592
        %v594 = vand.u32 %v593, 4294901760
        %595 = vmatmul.mubr.f32.gmra.mrb[0].mxu0 %v594
        %v596 = vpop.f32.mrb[0].mxu0
        %v597 = vadd.f32 %v500, %v596
        %v598 = vpop.f32.mrb[0].mxu0
        %599 = vmatprep.mubr.f32.mxu0 0.0
        %v600 = vand.u32 %v209, 4294901760
        %v601 = vsub.f32 %v209, %v600
        %v602 = vand.u32 %v601, 4294901760
        %603 = vmatmul.mubr.f32.gmra.mrb[0].mxu0 %v602
        %v604 = vpop.f32.mrb[0].mxu0
        %v605 = vadd.f32 %v507, %v604
        %v606 = vpop.f32.mrb[0].mxu0
        %607 = vmatprep.mubr.f32.mxu0 0.0
        %v608 = vand.u32 %v212, 4294901760
        %v609 = vsub.f32 %v212, %v608
        %v610 = vand.u32 %v609, 4294901760
        %611 = vmatmul.mubr.f32.gmra.mrb[0].mxu0 %v610
        %v612 = vpop.f32.mrb[0].mxu0
        %v613 = vadd.f32 %v514, %v612
        %v614 = vpop.f32.mrb[0].mxu0
        %615 = vdwg.mxu0
        %616 = vmatprep.subr.mxu0 0.0
        %v617 = vand.u32 %v190, 4294901760
        %v618 = vsub.f32 %v190, %v617
        %v619 = vand.u32 %v618, 4294901760
        %620 = vmatpush1.msra.mxu0 %v619
        %621 = vmatprep.subr.mxu0 0.0
        %v622 = vand.u32 %v191, 4294901760
        %v623 = vsub.f32 %v191, %v622
        %v624 = vand.u32 %v623, 4294901760
        %625 = vmatpush1.msra.mxu0 %v624
        %626 = vmatprep.subr.mxu0 0.0
        %627 = vmatpush1.msra.mxu0 0.0
        %628 = vmatprep.subr.mxu0 0.0
        %629 = vmatpush1.msra.mxu0 0.0
        %630 = vmatprep.subr.mxu0 0.0
        %631 = vmatpush1.msra.mxu0 0.0
        %632 = vmatprep.subr.mxu0 0.0
        %633 = vmatpush1.msra.mxu0 0.0
        %634 = vmatprep.subr.mxu0 0.0
        %635 = vmatpush1.msra.mxu0 0.0
        %636 = vmatprep.subr.mxu0 0.0
        %637 = vmatpush1.msra.mxu0 0.0
        %638 = vmatprep.subr.mxu0 0.0
        %639 = vmatpush1.msra.mxu0 0.0
        %640 = vmatprep.subr.mxu0 0.0
        %641 = vmatpush1.msra.mxu0 0.0
        %642 = vmatprep.subr.mxu0 0.0
        %643 = vmatpush1.msra.mxu0 0.0
        %644 = vmatprep.subr.mxu0 0.0
        %645 = vmatpush1.msra.mxu0 0.0
        %646 = vmatprep.subr.mxu0 0.0
        %647 = vmatpush1.msra.mxu0 0.0
        %648 = vmatprep.subr.mxu0 0.0
        %649 = vmatpush1.msra.mxu0 0.0
        %650 = vmatprep.subr.mxu0 0.0
        %651 = vmatpush1.msra.mxu0 0.0
        %652 = vmatprep.subr.mxu0 0.0
        %653 = vmatpush1.msra.mxu0 0.0
        %654 = vmatprep.subr.mxu0 0.0
        %655 = vmatpush1.msra.mxu0 0.0
        %656 = vmatprep.subr.mxu0 0.0
        %657 = vmatpush1.msra.mxu0 0.0
        %658 = vmatprep.subr.mxu0 0.0
        %659 = vmatpush1.msra.mxu0 0.0
        %660 = vmatprep.subr.mxu0 0.0
        %661 = vmatpush1.msra.mxu0 0.0
        %662 = vmatprep.subr.mxu0 0.0
        %663 = vmatpush1.msra.mxu0 0.0
        %664 = vmatprep.subr.mxu0 0.0
        %665 = vmatpush1.msra.mxu0 0.0
        %666 = vmatprep.subr.mxu0 0.0
        %667 = vmatpush1.msra.mxu0 0.0
        %668 = vmatprep.subr.mxu0 0.0
        %669 = vmatpush1.msra.mxu0 0.0
        %670 = vmatprep.subr.mxu0 0.0
        %671 = vmatpush1.msra.mxu0 0.0
        %672 = vmatprep.subr.mxu0 0.0
        %673 = vmatpush1.msra.mxu0 0.0
        %674 = vmatprep.subr.mxu0 0.0
        %675 = vmatpush1.msra.mxu0 0.0
        %676 = vmatprep.subr.mxu0 0.0
        %677 = vmatpush1.msra.mxu0 0.0
        %678 = vmatprep.subr.mxu0 0.0
        %679 = vmatpush1.msra.mxu0 0.0
        %680 = vmatprep.subr.mxu0 0.0
        %681 = vmatpush1.msra.mxu0 0.0
        %682 = vmatprep.subr.mxu0 0.0
        %683 = vmatpush1.msra.mxu0 0.0
        %684 = vmatprep.subr.mxu0 0.0
        %685 = vmatpush1.msra.mxu0 0.0
        %686 = vmatprep.mubr.f32.mxu0 0.0
        %v687 = vand.u32 %v203, 4294901760
        %688 = vmatmul.mubr.f32.gmra.mrb[0].mxu0 %v687
        %v689 = vpop.f32.mrb[0].mxu0
        %v690 = vadd.f32 %v589, %v689
        %v691 = vpop.f32.mrb[0].mxu0
        %692 = vmatprep.mubr.f32.mxu0 0.0
        %v693 = vand.u32 %v206, 4294901760
        %694 = vmatmul.mubr.f32.gmra.mrb[0].mxu0 %v693
        %v695 = vpop.f32.mrb[0].mxu0
        %v696 = vadd.f32 %v597, %v695
        %v697 = vpop.f32.mrb[0].mxu0
        %698 = vmatprep.mubr.f32.mxu0 0.0
        %v699 = vand.u32 %v209, 4294901760
        %700 = vmatmul.mubr.f32.gmra.mrb[0].mxu0 %v699
        %v701 = vpop.f32.mrb[0].mxu0
        %v702 = vadd.f32 %v605, %v701
        %v703 = vpop.f32.mrb[0].mxu0
        %704 = vmatprep.mubr.f32.mxu0 0.0
        %v705 = vand.u32 %v212, 4294901760
        %706 = vmatmul.mubr.f32.gmra.mrb[0].mxu0 %v705
        %v707 = vpop.f32.mrb[0].mxu0
        %v708 = vadd.f32 %v613, %v707
        %v709 = vpop.f32.mrb[0].mxu0
        %710 = vdwg.mxu0
        %711 = vmatprep.subr.mxu0 0.0
        %v712 = vand.u32 %v190, 4294901760
        %713 = vmatpush1.msra.mxu0 %v712
        %714 = vmatprep.subr.mxu0 0.0
        %v715 = vand.u32 %v191, 4294901760
        %716 = vmatpush1.msra.mxu0 %v715
        %717 = vmatprep.subr.mxu0 0.0
        %718 = vmatpush1.msra.mxu0 0.0
        %719 = vmatprep.subr.mxu0 0.0
        %720 = vmatpush1.msra.mxu0 0.0
        %721 = vmatprep.subr.mxu0 0.0
        %722 = vmatpush1.msra.mxu0 0.0
        %723 = vmatprep.subr.mxu0 0.0
        %724 = vmatpush1.msra.mxu0 0.0
        %725 = vmatprep.subr.mxu0 0.0
        %726 = vmatpush1.msra.mxu0 0.0
        %727 = vmatprep.subr.mxu0 0.0
        %728 = vmatpush1.msra.mxu0 0.0
        %729 = vmatprep.subr.mxu0 0.0
        %730 = vmatpush1.msra.mxu0 0.0
        %731 = vmatprep.subr.mxu0 0.0
        %732 = vmatpush1.msra.mxu0 0.0
        %733 = vmatprep.subr.mxu0 0.0
        %734 = vmatpush1.msra.mxu0 0.0
        %735 = vmatprep.subr.mxu0 0.0
        %736 = vmatpush1.msra.mxu0 0.0
        %737 = vmatprep.subr.mxu0 0.0
        %738 = vmatpush1.msra.mxu0 0.0
        %739 = vmatprep.subr.mxu0 0.0
        %740 = vmatpush1.msra.mxu0 0.0
        %741 = vmatprep.subr.mxu0 0.0
        %742 = vmatpush1.msra.mxu0 0.0
        %743 = vmatprep.subr.mxu0 0.0
        %744 = vmatpush1.msra.mxu0 0.0
        %745 = vmatprep.subr.mxu0 0.0
        %746 = vmatpush1.msra.mxu0 0.0
        %747 = vmatprep.subr.mxu0 0.0
        %748 = vmatpush1.msra.mxu0 0.0
        %749 = vmatprep.subr.mxu0 0.0
        %750 = vmatpush1.msra.mxu0 0.0
        %751 = vmatprep.subr.mxu0 0.0
        %752 = vmatpush1.msra.mxu0 0.0
        %753 = vmatprep.subr.mxu0 0.0
        %754 = vmatpush1.msra.mxu0 0.0
        %755 = vmatprep.subr.mxu0 0.0
        %756 = vmatpush1.msra.mxu0 0.0
        %757 = vmatprep.subr.mxu0 0.0
        %758 = vmatpush1.msra.mxu0 0.0
        %759 = vmatprep.subr.mxu0 0.0
        %760 = vmatpush1.msra.mxu0 0.0
        %761 = vmatprep.subr.mxu0 0.0
        %762 = vmatpush1.msra.mxu0 0.0
        %763 = vmatprep.subr.mxu0 0.0
        %764 = vmatpush1.msra.mxu0 0.0
        %765 = vmatprep.subr.mxu0 0.0
        %766 = vmatpush1.msra.mxu0 0.0
        %767 = vmatprep.subr.mxu0 0.0
        %768 = vmatpush1.msra.mxu0 0.0
        %769 = vmatprep.subr.mxu0 0.0
        %770 = vmatpush1.msra.mxu0 0.0
        %771 = vmatprep.subr.mxu0 0.0
        %772 = vmatpush1.msra.mxu0 0.0
        %773 = vmatprep.subr.mxu0 0.0
        %774 = vmatpush1.msra.mxu0 0.0
        %775 = vmatprep.subr.mxu0 0.0
        %776 = vmatpush1.msra.mxu0 0.0
        %777 = vmatprep.mubr.f32.mxu0 0.0
        %v778 = vand.u32 %v203, 4294901760
        %779 = vmatmul.mubr.f32.gmra.mrb[0].mxu0 %v778
        %v780 = vpop.f32.mrb[0].mxu0
        %v781 = vadd.f32 %v690, %v780
        %v782 = vpop.f32.mrb[0].mxu0
        %783 = vmatprep.mubr.f32.mxu0 0.0
        %v784 = vand.u32 %v206, 4294901760
        %785 = vmatmul.mubr.f32.gmra.mrb[0].mxu0 %v784
        %v786 = vpop.f32.mrb[0].mxu0
        %v787 = vadd.f32 %v696, %v786
        %v788 = vpop.f32.mrb[0].mxu0
        %789 = vmatprep.mubr.f32.mxu0 0.0
        %v790 = vand.u32 %v209, 4294901760
        %791 = vmatmul.mubr.f32.gmra.mrb[0].mxu0 %v790
        %v792 = vpop.f32.mrb[0].mxu0
        %v793 = vadd.f32 %v702, %v792
        %v794 = vpop.f32.mrb[0].mxu0
        %795 = vmatprep.mubr.f32.mxu0 0.0
        %v796 = vand.u32 %v212, 4294901760
        %797 = vmatmul.mubr.f32.gmra.mrb[0].mxu0 %v796
        %v798 = vpop.f32.mrb[0].mxu0
        %v799 = vadd.f32 %v708, %v798
        %v800 = vpop.f32.mrb[0].mxu0
        %801 = vdwg.mxu0
        %v803 = vsel %vm201, %v192, 0
        %v806 = vsel %vm201, %v193, 0
        %v809 = vsel %vm201, %v194, 0
        %v812 = vsel %vm201, %v195, 0
        %814 = vmatprep.subr.mxu0 0.0
        %v815 = vand.u32 %v182, 4294901760
        %816 = vmatpush1.msra.mxu0 %v815
        %817 = vmatprep.subr.mxu0 0.0
        %v818 = vand.u32 %v183, 4294901760
        %819 = vmatpush1.msra.mxu0 %v818
        %820 = vmatprep.subr.mxu0 0.0
        %821 = vmatpush1.msra.mxu0 0.0
        %822 = vmatprep.subr.mxu0 0.0
        %823 = vmatpush1.msra.mxu0 0.0
        %824 = vmatprep.subr.mxu0 0.0
        %825 = vmatpush1.msra.mxu0 0.0
        %826 = vmatprep.subr.mxu0 0.0
        %827 = vmatpush1.msra.mxu0 0.0
        %828 = vmatprep.subr.mxu0 0.0
        %829 = vmatpush1.msra.mxu0 0.0
        %830 = vmatprep.subr.mxu0 0.0
        %831 = vmatpush1.msra.mxu0 0.0
        %832 = vmatprep.subr.mxu0 0.0
        %833 = vmatpush1.msra.mxu0 0.0
        %834 = vmatprep.subr.mxu0 0.0
        %835 = vmatpush1.msra.mxu0 0.0
        %836 = vmatprep.subr.mxu0 0.0
        %837 = vmatpush1.msra.mxu0 0.0
        %838 = vmatprep.subr.mxu0 0.0
        %839 = vmatpush1.msra.mxu0 0.0
        %840 = vmatprep.subr.mxu0 0.0
        %841 = vmatpush1.msra.mxu0 0.0
        %842 = vmatprep.subr.mxu0 0.0
        %843 = vmatpush1.msra.mxu0 0.0
        %844 = vmatprep.subr.mxu0 0.0
        %845 = vmatpush1.msra.mxu0 0.0
        %846 = vmatprep.subr.mxu0 0.0
        %847 = vmatpush1.msra.mxu0 0.0
        %848 = vmatprep.subr.mxu0 0.0
        %849 = vmatpush1.msra.mxu0 0.0
        %850 = vmatprep.subr.mxu0 0.0
        %851 = vmatpush1.msra.mxu0 0.0
        %852 = vmatprep.subr.mxu0 0.0
        %853 = vmatpush1.msra.mxu0 0.0
        %854 = vmatprep.subr.mxu0 0.0
        %855 = vmatpush1.msra.mxu0 0.0
        %856 = vmatprep.subr.mxu0 0.0
        %857 = vmatpush1.msra.mxu0 0.0
        %858 = vmatprep.subr.mxu0 0.0
        %859 = vmatpush1.msra.mxu0 0.0
        %860 = vmatprep.subr.mxu0 0.0
        %861 = vmatpush1.msra.mxu0 0.0
        %862 = vmatprep.subr.mxu0 0.0
        %863 = vmatpush1.msra.mxu0 0.0
        %864 = vmatprep.subr.mxu0 0.0
        %865 = vmatpush1.msra.mxu0 0.0
        %866 = vmatprep.subr.mxu0 0.0
        %867 = vmatpush1.msra.mxu0 0.0
        %868 = vmatprep.subr.mxu0 0.0
        %869 = vmatpush1.msra.mxu0 0.0
        %870 = vmatprep.subr.mxu0 0.0
        %871 = vmatpush1.msra.mxu0 0.0
        %872 = vmatprep.subr.mxu0 0.0
        %873 = vmatpush1.msra.mxu0 0.0
        %874 = vmatprep.subr.mxu0 0.0
        %875 = vmatpush1.msra.mxu0 0.0
        %876 = vmatprep.subr.mxu0 0.0
        %877 = vmatpush1.msra.mxu0 0.0
        %878 = vmatprep.subr.mxu0 0.0
        %879 = vmatpush1.msra.mxu0 0.0
        %880 = vmatprep.mubr.f32.mxu0 0.0
        %v881 = vand.u32 %v803, 4294901760
        %v882 = vsub.f32 %v803, %v881
        %v883 = vand.u32 %v882, 4294901760
        %v884 = vsub.f32 %v882, %v883
        %v885 = vand.u32 %v884, 4294901760
        %886 = vmatmul.mubr.f32.gmra.mrb[0].mxu0 %v885
        %v887 = vpop.f32.mrb[0].mxu0
        %v888 = vadd.f32 %v781, %v887
        %v889 = vpop.f32.mrb[0].mxu0
        %890 = vmatprep.mubr.f32.mxu0 0.0
        %v891 = vand.u32 %v806, 4294901760
        %v892 = vsub.f32 %v806, %v891
        %v893 = vand.u32 %v892, 4294901760
        %v894 = vsub.f32 %v892, %v893
        %v895 = vand.u32 %v894, 4294901760
        %896 = vmatmul.mubr.f32.gmra.mrb[0].mxu0 %v895
        %v897 = vpop.f32.mrb[0].mxu0
        %v898 = vadd.f32 %v787, %v897
        %v899 = vpop.f32.mrb[0].mxu0
        %900 = vmatprep.mubr.f32.mxu0 0.0
        %v901 = vand.u32 %v809, 4294901760
        %v902 = vsub.f32 %v809, %v901
        %v903 = vand.u32 %v902, 4294901760
        %v904 = vsub.f32 %v902, %v903
        %v905 = vand.u32 %v904, 4294901760
        %906 = vmatmul.mubr.f32.gmra.mrb[0].mxu0 %v905
        %v907 = vpop.f32.mrb[0].mxu0
        %v908 = vadd.f32 %v793, %v907
        %v909 = vpop.f32.mrb[0].mxu0
        %910 = vmatprep.mubr.f32.mxu0 0.0
        %v911 = vand.u32 %v812, 4294901760
        %v912 = vsub.f32 %v812, %v911
        %v913 = vand.u32 %v912, 4294901760
        %v914 = vsub.f32 %v912, %v913
        %v915 = vand.u32 %v914, 4294901760
        %916 = vmatmul.mubr.f32.gmra.mrb[0].mxu0 %v915
        %v917 = vpop.f32.mrb[0].mxu0
        %v918 = vadd.f32 %v799, %v917
        %v919 = vpop.f32.mrb[0].mxu0
        %920 = vdwg.mxu0
        %921 = vmatprep.subr.mxu0 0.0
        %v922 = vand.u32 %v182, 4294901760
        %v923 = vsub.f32 %v182, %v922
        %v924 = vand.u32 %v923, 4294901760
        %v925 = vsub.f32 %v923, %v924
        %v926 = vand.u32 %v925, 4294901760
        %927 = vmatpush1.msra.mxu0 %v926
        %928 = vmatprep.subr.mxu0 0.0
        %v929 = vand.u32 %v183, 4294901760
        %v930 = vsub.f32 %v183, %v929
        %v931 = vand.u32 %v930, 4294901760
        %v932 = vsub.f32 %v930, %v931
        %v933 = vand.u32 %v932, 4294901760
        %934 = vmatpush1.msra.mxu0 %v933
        %935 = vmatprep.subr.mxu0 0.0
        %936 = vmatpush1.msra.mxu0 0.0
        %937 = vmatprep.subr.mxu0 0.0
        %938 = vmatpush1.msra.mxu0 0.0
        %939 = vmatprep.subr.mxu0 0.0
        %940 = vmatpush1.msra.mxu0 0.0
        %941 = vmatprep.subr.mxu0 0.0
        %942 = vmatpush1.msra.mxu0 0.0
        %943 = vmatprep.subr.mxu0 0.0
        %944 = vmatpush1.msra.mxu0 0.0
        %945 = vmatprep.subr.mxu0 0.0
        %946 = vmatpush1.msra.mxu0 0.0
        %947 = vmatprep.subr.mxu0 0.0
        %948 = vmatpush1.msra.mxu0 0.0
        %949 = vmatprep.subr.mxu0 0.0
        %950 = vmatpush1.msra.mxu0 0.0
        %951 = vmatprep.subr.mxu0 0.0
        %952 = vmatpush1.msra.mxu0 0.0
        %953 = vmatprep.subr.mxu0 0.0
        %954 = vmatpush1.msra.mxu0 0.0
        %955 = vmatprep.subr.mxu0 0.0
        %956 = vmatpush1.msra.mxu0 0.0
        %957 = vmatprep.subr.mxu0 0.0
        %958 = vmatpush1.msra.mxu0 0.0
        %959 = vmatprep.subr.mxu0 0.0
        %960 = vmatpush1.msra.mxu0 0.0
        %961 = vmatprep.subr.mxu0 0.0
        %962 = vmatpush1.msra.mxu0 0.0
        %963 = vmatprep.subr.mxu0 0.0
        %964 = vmatpush1.msra.mxu0 0.0
        %965 = vmatprep.subr.mxu0 0.0
        %966 = vmatpush1.msra.mxu0 0.0
        %967 = vmatprep.subr.mxu0 0.0
        %968 = vmatpush1.msra.mxu0 0.0
        %969 = vmatprep.subr.mxu0 0.0
        %970 = vmatpush1.msra.mxu0 0.0
        %971 = vmatprep.subr.mxu0 0.0
        %972 = vmatpush1.msra.mxu0 0.0
        %973 = vmatprep.subr.mxu0 0.0
        %974 = vmatpush1.msra.mxu0 0.0
        %975 = vmatprep.subr.mxu0 0.0
        %976 = vmatpush1.msra.mxu0 0.0
        %977 = vmatprep.subr.mxu0 0.0
        %978 = vmatpush1.msra.mxu0 0.0
        %979 = vmatprep.subr.mxu0 0.0
        %980 = vmatpush1.msra.mxu0 0.0
        %981 = vmatprep.subr.mxu0 0.0
        %982 = vmatpush1.msra.mxu0 0.0
        %983 = vmatprep.subr.mxu0 0.0
        %984 = vmatpush1.msra.mxu0 0.0
        %985 = vmatprep.subr.mxu0 0.0
        %986 = vmatpush1.msra.mxu0 0.0
        %987 = vmatprep.subr.mxu0 0.0
        %988 = vmatpush1.msra.mxu0 0.0
        %989 = vmatprep.subr.mxu0 0.0
        %990 = vmatpush1.msra.mxu0 0.0
        %991 = vmatprep.subr.mxu0 0.0
        %992 = vmatpush1.msra.mxu0 0.0
        %993 = vmatprep.subr.mxu0 0.0
        %994 = vmatpush1.msra.mxu0 0.0
        %995 = vmatprep.mubr.f32.mxu0 0.0
        %v996 = vand.u32 %v803, 4294901760
        %997 = vmatmul.mubr.f32.gmra.mrb[0].mxu0 %v996
        %v998 = vpop.f32.mrb[0].mxu0
        %v999 = vadd.f32 %v888, %v998
        %v1000 = vpop.f32.mrb[0].mxu0
        %1001 = vmatprep.mubr.f32.mxu0 0.0
        %v1002 = vand.u32 %v806, 4294901760
        %1003 = vmatmul.mubr.f32.gmra.mrb[0].mxu0 %v1002
        %v1004 = vpop.f32.mrb[0].mxu0
        %v1005 = vadd.f32 %v898, %v1004
        %v1006 = vpop.f32.mrb[0].mxu0
        %1007 = vmatprep.mubr.f32.mxu0 0.0
        %v1008 = vand.u32 %v809, 4294901760
        %1009 = vmatmul.mubr.f32.gmra.mrb[0].mxu0 %v1008
        %v1010 = vpop.f32.mrb[0].mxu0
        %v1011 = vadd.f32 %v908, %v1010
        %v1012 = vpop.f32.mrb[0].mxu0
        %1013 = vmatprep.mubr.f32.mxu0 0.0
        %v1014 = vand.u32 %v812, 4294901760
        %1015 = vmatmul.mubr.f32.gmra.mrb[0].mxu0 %v1014
        %v1016 = vpop.f32.mrb[0].mxu0
        %v1017 = vadd.f32 %v918, %v1016
        %v1018 = vpop.f32.mrb[0].mxu0
        %1019 = vdwg.mxu0
        %1020 = vmatprep.subr.mxu0 0.0
        %v1021 = vand.u32 %v182, 4294901760
        %v1022 = vsub.f32 %v182, %v1021
        %1023 = vmatpush1.msra.mxu0 %v1022
        %1024 = vmatprep.subr.mxu0 0.0
        %v1025 = vand.u32 %v183, 4294901760
        %v1026 = vsub.f32 %v183, %v1025
        %1027 = vmatpush1.msra.mxu0 %v1026
        %1028 = vmatprep.subr.mxu0 0.0
        %1029 = vmatpush1.msra.mxu0 0.0
        %1030 = vmatprep.subr.mxu0 0.0
        %1031 = vmatpush1.msra.mxu0 0.0
        %1032 = vmatprep.subr.mxu0 0.0
        %1033 = vmatpush1.msra.mxu0 0.0
        %1034 = vmatprep.subr.mxu0 0.0
        %1035 = vmatpush1.msra.mxu0 0.0
        %1036 = vmatprep.subr.mxu0 0.0
        %1037 = vmatpush1.msra.mxu0 0.0
        %1038 = vmatprep.subr.mxu0 0.0
        %1039 = vmatpush1.msra.mxu0 0.0
        %1040 = vmatprep.subr.mxu0 0.0
        %1041 = vmatpush1.msra.mxu0 0.0
        %1042 = vmatprep.subr.mxu0 0.0
        %1043 = vmatpush1.msra.mxu0 0.0
        %1044 = vmatprep.subr.mxu0 0.0
        %1045 = vmatpush1.msra.mxu0 0.0
        %1046 = vmatprep.subr.mxu0 0.0
        %1047 = vmatpush1.msra.mxu0 0.0
        %1048 = vmatprep.subr.mxu0 0.0
        %1049 = vmatpush1.msra.mxu0 0.0
        %1050 = vmatprep.subr.mxu0 0.0
        %1051 = vmatpush1.msra.mxu0 0.0
        %1052 = vmatprep.subr.mxu0 0.0
        %1053 = vmatpush1.msra.mxu0 0.0
        %1054 = vmatprep.subr.mxu0 0.0
        %1055 = vmatpush1.msra.mxu0 0.0
        %1056 = vmatprep.subr.mxu0 0.0
        %1057 = vmatpush1.msra.mxu0 0.0
        %1058 = vmatprep.subr.mxu0 0.0
        %1059 = vmatpush1.msra.mxu0 0.0
        %1060 = vmatprep.subr.mxu0 0.0
        %1061 = vmatpush1.msra.mxu0 0.0
        %1062 = vmatprep.subr.mxu0 0.0
        %1063 = vmatpush1.msra.mxu0 0.0
        %1064 = vmatprep.subr.mxu0 0.0
        %1065 = vmatpush1.msra.mxu0 0.0
        %1066 = vmatprep.subr.mxu0 0.0
        %1067 = vmatpush1.msra.mxu0 0.0
        %1068 = vmatprep.subr.mxu0 0.0
        %1069 = vmatpush1.msra.mxu0 0.0
        %1070 = vmatprep.subr.mxu0 0.0
        %1071 = vmatpush1.msra.mxu0 0.0
        %1072 = vmatprep.subr.mxu0 0.0
        %1073 = vmatpush1.msra.mxu0 0.0
        %1074 = vmatprep.subr.mxu0 0.0
        %1075 = vmatpush1.msra.mxu0 0.0
        %1076 = vmatprep.subr.mxu0 0.0
        %1077 = vmatpush1.msra.mxu0 0.0
        %1078 = vmatprep.subr.mxu0 0.0
        %1079 = vmatpush1.msra.mxu0 0.0
        %1080 = vmatprep.subr.mxu0 0.0
        %1081 = vmatpush1.msra.mxu0 0.0
        %1082 = vmatprep.subr.mxu0 0.0
        %1083 = vmatpush1.msra.mxu0 0.0
        %1084 = vmatprep.subr.mxu0 0.0
        %1085 = vmatpush1.msra.mxu0 0.0
        %1086 = vmatprep.subr.mxu0 0.0
        %1087 = vmatpush1.msra.mxu0 0.0
        %1088 = vmatprep.mubr.f32.mxu0 0.0
        %v1089 = vand.u32 %v803, 4294901760
        %v1090 = vsub.f32 %v803, %v1089
        %1091 = vmatmul.mubr.f32.gmra.mrb[0].mxu0 %v1090
        %v1092 = vpop.f32.mrb[0].mxu0
        %v1093 = vadd.f32 %v999, %v1092
        %v1094 = vpop.f32.mrb[0].mxu0
        %1095 = vmatprep.mubr.f32.mxu0 0.0
        %v1096 = vand.u32 %v806, 4294901760
        %v1097 = vsub.f32 %v806, %v1096
        %1098 = vmatmul.mubr.f32.gmra.mrb[0].mxu0 %v1097
        %v1099 = vpop.f32.mrb[0].mxu0
        %v1100 = vadd.f32 %v1005, %v1099
        %v1101 = vpop.f32.mrb[0].mxu0
        %1102 = vmatprep.mubr.f32.mxu0 0.0
        %v1103 = vand.u32 %v809, 4294901760
        %v1104 = vsub.f32 %v809, %v1103
        %1105 = vmatmul.mubr.f32.gmra.mrb[0].mxu0 %v1104
        %v1106 = vpop.f32.mrb[0].mxu0
        %v1107 = vadd.f32 %v1011, %v1106
        %v1108 = vpop.f32.mrb[0].mxu0
        %1109 = vmatprep.mubr.f32.mxu0 0.0
        %v1110 = vand.u32 %v812, 4294901760
        %v1111 = vsub.f32 %v812, %v1110
        %1112 = vmatmul.mubr.f32.gmra.mrb[0].mxu0 %v1111
        %v1113 = vpop.f32.mrb[0].mxu0
        %v1114 = vadd.f32 %v1017, %v1113
        %v1115 = vpop.f32.mrb[0].mxu0
        %1116 = vdwg.mxu0
        %1117 = vmatprep.subr.mxu0 0.0
        %v1118 = vand.u32 %v182, 4294901760
        %1119 = vmatpush1.msra.mxu0 %v1118
        %1120 = vmatprep.subr.mxu0 0.0
        %v1121 = vand.u32 %v183, 4294901760
        %1122 = vmatpush1.msra.mxu0 %v1121
        %1123 = vmatprep.subr.mxu0 0.0
        %1124 = vmatpush1.msra.mxu0 0.0
        %1125 = vmatprep.subr.mxu0 0.0
        %1126 = vmatpush1.msra.mxu0 0.0
        %1127 = vmatprep.subr.mxu0 0.0
        %1128 = vmatpush1.msra.mxu0 0.0
        %1129 = vmatprep.subr.mxu0 0.0
        %1130 = vmatpush1.msra.mxu0 0.0
        %1131 = vmatprep.subr.mxu0 0.0
        %1132 = vmatpush1.msra.mxu0 0.0
        %1133 = vmatprep.subr.mxu0 0.0
        %1134 = vmatpush1.msra.mxu0 0.0
        %1135 = vmatprep.subr.mxu0 0.0
        %1136 = vmatpush1.msra.mxu0 0.0
        %1137 = vmatprep.subr.mxu0 0.0
        %1138 = vmatpush1.msra.mxu0 0.0
        %1139 = vmatprep.subr.mxu0 0.0
        %1140 = vmatpush1.msra.mxu0 0.0
        %1141 = vmatprep.subr.mxu0 0.0
        %1142 = vmatpush1.msra.mxu0 0.0
        %1143 = vmatprep.subr.mxu0 0.0
        %1144 = vmatpush1.msra.mxu0 0.0
        %1145 = vmatprep.subr.mxu0 0.0
        %1146 = vmatpush1.msra.mxu0 0.0
        %1147 = vmatprep.subr.mxu0 0.0
        %1148 = vmatpush1.msra.mxu0 0.0
        %1149 = vmatprep.subr.mxu0 0.0
        %1150 = vmatpush1.msra.mxu0 0.0
        %1151 = vmatprep.subr.mxu0 0.0
        %1152 = vmatpush1.msra.mxu0 0.0
        %1153 = vmatprep.subr.mxu0 0.0
        %1154 = vmatpush1.msra.mxu0 0.0
        %1155 = vmatprep.subr.mxu0 0.0
        %1156 = vmatpush1.msra.mxu0 0.0
        %1157 = vmatprep.subr.mxu0 0.0
        %1158 = vmatpush1.msra.mxu0 0.0
        %1159 = vmatprep.subr.mxu0 0.0
        %1160 = vmatpush1.msra.mxu0 0.0
        %1161 = vmatprep.subr.mxu0 0.0
        %1162 = vmatpush1.msra.mxu0 0.0
        %1163 = vmatprep.subr.mxu0 0.0
        %1164 = vmatpush1.msra.mxu0 0.0
        %1165 = vmatprep.subr.mxu0 0.0
        %1166 = vmatpush1.msra.mxu0 0.0
        %1167 = vmatprep.subr.mxu0 0.0
        %1168 = vmatpush1.msra.mxu0 0.0
        %1169 = vmatprep.subr.mxu0 0.0
        %1170 = vmatpush1.msra.mxu0 0.0
        %1171 = vmatprep.subr.mxu0 0.0
        %1172 = vmatpush1.msra.mxu0 0.0
        %1173 = vmatprep.subr.mxu0 0.0
        %1174 = vmatpush1.msra.mxu0 0.0
        %1175 = vmatprep.subr.mxu0 0.0
        %1176 = vmatpush1.msra.mxu0 0.0
        %1177 = vmatprep.subr.mxu0 0.0
        %1178 = vmatpush1.msra.mxu0 0.0
        %1179 = vmatprep.subr.mxu0 0.0
        %1180 = vmatpush1.msra.mxu0 0.0
        %1181 = vmatprep.subr.mxu0 0.0
        %1182 = vmatpush1.msra.mxu0 0.0
        %1183 = vmatprep.mubr.f32.mxu0 0.0
        %v1184 = vand.u32 %v803, 4294901760
        %v1185 = vsub.f32 %v803, %v1184
        %v1186 = vand.u32 %v1185, 4294901760
        %1187 = vmatmul.mubr.f32.gmra.mrb[0].mxu0 %v1186
        %v1188 = vpop.f32.mrb[0].mxu0
        %v1189 = vadd.f32 %v1093, %v1188
        %v1190 = vpop.f32.mrb[0].mxu0
        %1191 = vmatprep.mubr.f32.mxu0 0.0
        %v1192 = vand.u32 %v806, 4294901760
        %v1193 = vsub.f32 %v806, %v1192
        %v1194 = vand.u32 %v1193, 4294901760
        %1195 = vmatmul.mubr.f32.gmra.mrb[0].mxu0 %v1194
        %v1196 = vpop.f32.mrb[0].mxu0
        %v1197 = vadd.f32 %v1100, %v1196
        %v1198 = vpop.f32.mrb[0].mxu0
        %1199 = vmatprep.mubr.f32.mxu0 0.0
        %v1200 = vand.u32 %v809, 4294901760
        %v1201 = vsub.f32 %v809, %v1200
        %v1202 = vand.u32 %v1201, 4294901760
        %1203 = vmatmul.mubr.f32.gmra.mrb[0].mxu0 %v1202
        %v1204 = vpop.f32.mrb[0].mxu0
        %v1205 = vadd.f32 %v1107, %v1204
        %v1206 = vpop.f32.mrb[0].mxu0
        %1207 = vmatprep.mubr.f32.mxu0 0.0
        %v1208 = vand.u32 %v812, 4294901760
        %v1209 = vsub.f32 %v812, %v1208
        %v1210 = vand.u32 %v1209, 4294901760
        %1211 = vmatmul.mubr.f32.gmra.mrb[0].mxu0 %v1210
        %v1212 = vpop.f32.mrb[0].mxu0
        %v1213 = vadd.f32 %v1114, %v1212
        %v1214 = vpop.f32.mrb[0].mxu0
        %1215 = vdwg.mxu0
        %1216 = vmatprep.subr.mxu0 0.0
        %v1217 = vand.u32 %v182, 4294901760
        %v1218 = vsub.f32 %v182, %v1217
        %v1219 = vand.u32 %v1218, 4294901760
        %1220 = vmatpush1.msra.mxu0 %v1219
        %1221 = vmatprep.subr.mxu0 0.0
        %v1222 = vand.u32 %v183, 4294901760
        %v1223 = vsub.f32 %v183, %v1222
        %v1224 = vand.u32 %v1223, 4294901760
        %1225 = vmatpush1.msra.mxu0 %v1224
        %1226 = vmatprep.subr.mxu0 0.0
        %1227 = vmatpush1.msra.mxu0 0.0
        %1228 = vmatprep.subr.mxu0 0.0
        %1229 = vmatpush1.msra.mxu0 0.0
        %1230 = vmatprep.subr.mxu0 0.0
        %1231 = vmatpush1.msra.mxu0 0.0
        %1232 = vmatprep.subr.mxu0 0.0
        %1233 = vmatpush1.msra.mxu0 0.0
        %1234 = vmatprep.subr.mxu0 0.0
        %1235 = vmatpush1.msra.mxu0 0.0
        %1236 = vmatprep.subr.mxu0 0.0
        %1237 = vmatpush1.msra.mxu0 0.0
        %1238 = vmatprep.subr.mxu0 0.0
        %1239 = vmatpush1.msra.mxu0 0.0
        %1240 = vmatprep.subr.mxu0 0.0
        %1241 = vmatpush1.msra.mxu0 0.0
        %1242 = vmatprep.subr.mxu0 0.0
        %1243 = vmatpush1.msra.mxu0 0.0
        %1244 = vmatprep.subr.mxu0 0.0
        %1245 = vmatpush1.msra.mxu0 0.0
        %1246 = vmatprep.subr.mxu0 0.0
        %1247 = vmatpush1.msra.mxu0 0.0
        %1248 = vmatprep.subr.mxu0 0.0
        %1249 = vmatpush1.msra.mxu0 0.0
        %1250 = vmatprep.subr.mxu0 0.0
        %1251 = vmatpush1.msra.mxu0 0.0
        %1252 = vmatprep.subr.mxu0 0.0
        %1253 = vmatpush1.msra.mxu0 0.0
        %1254 = vmatprep.subr.mxu0 0.0
        %1255 = vmatpush1.msra.mxu0 0.0
        %1256 = vmatprep.subr.mxu0 0.0
        %1257 = vmatpush1.msra.mxu0 0.0
        %1258 = vmatprep.subr.mxu0 0.0
        %1259 = vmatpush1.msra.mxu0 0.0
        %1260 = vmatprep.subr.mxu0 0.0
        %1261 = vmatpush1.msra.mxu0 0.0
        %1262 = vmatprep.subr.mxu0 0.0
        %1263 = vmatpush1.msra.mxu0 0.0
        %1264 = vmatprep.subr.mxu0 0.0
        %1265 = vmatpush1.msra.mxu0 0.0
        %1266 = vmatprep.subr.mxu0 0.0
        %1267 = vmatpush1.msra.mxu0 0.0
        %1268 = vmatprep.subr.mxu0 0.0
        %1269 = vmatpush1.msra.mxu0 0.0
        %1270 = vmatprep.subr.mxu0 0.0
        %1271 = vmatpush1.msra.mxu0 0.0
        %1272 = vmatprep.subr.mxu0 0.0
        %1273 = vmatpush1.msra.mxu0 0.0
        %1274 = vmatprep.subr.mxu0 0.0
        %1275 = vmatpush1.msra.mxu0 0.0
        %1276 = vmatprep.subr.mxu0 0.0
        %1277 = vmatpush1.msra.mxu0 0.0
        %1278 = vmatprep.subr.mxu0 0.0
        %1279 = vmatpush1.msra.mxu0 0.0
        %1280 = vmatprep.subr.mxu0 0.0
        %1281 = vmatpush1.msra.mxu0 0.0
        %1282 = vmatprep.subr.mxu0 0.0
        %1283 = vmatpush1.msra.mxu0 0.0
        %1284 = vmatprep.subr.mxu0 0.0
        %1285 = vmatpush1.msra.mxu0 0.0
        %1286 = vmatprep.mubr.f32.mxu0 0.0
        %v1287 = vand.u32 %v803, 4294901760
        %1288 = vmatmul.mubr.f32.gmra.mrb[0].mxu0 %v1287
        %v1289 = vpop.f32.mrb[0].mxu0
        %v1290 = vadd.f32 %v1189, %v1289
        %v1291 = vpop.f32.mrb[0].mxu0
        %1292 = vmatprep.mubr.f32.mxu0 0.0
        %v1293 = vand.u32 %v806, 4294901760
        %1294 = vmatmul.mubr.f32.gmra.mrb[0].mxu0 %v1293
        %v1295 = vpop.f32.mrb[0].mxu0
        %v1296 = vadd.f32 %v1197, %v1295
        %v1297 = vpop.f32.mrb[0].mxu0
        %1298 = vmatprep.mubr.f32.mxu0 0.0
        %v1299 = vand.u32 %v809, 4294901760
        %1300 = vmatmul.mubr.f32.gmra.mrb[0].mxu0 %v1299
        %v1301 = vpop.f32.mrb[0].mxu0
        %v1302 = vadd.f32 %v1205, %v1301
        %v1303 = vpop.f32.mrb[0].mxu0
        %1304 = vmatprep.mubr.f32.mxu0 0.0
        %v1305 = vand.u32 %v812, 4294901760
        %1306 = vmatmul.mubr.f32.gmra.mrb[0].mxu0 %v1305
        %v1307 = vpop.f32.mrb[0].mxu0
        %v1308 = vadd.f32 %v1213, %v1307
        %v1309 = vpop.f32.mrb[0].mxu0
        %1310 = vdwg.mxu0
        %1311 = vmatprep.subr.mxu0 0.0
        %v1312 = vand.u32 %v182, 4294901760
        %1313 = vmatpush1.msra.mxu0 %v1312
        %1314 = vmatprep.subr.mxu0 0.0
        %v1315 = vand.u32 %v183, 4294901760
        %1316 = vmatpush1.msra.mxu0 %v1315
        %1317 = vmatprep.subr.mxu0 0.0
        %1318 = vmatpush1.msra.mxu0 0.0
        %1319 = vmatprep.subr.mxu0 0.0
        %1320 = vmatpush1.msra.mxu0 0.0
        %1321 = vmatprep.subr.mxu0 0.0
        %1322 = vmatpush1.msra.mxu0 0.0
        %1323 = vmatprep.subr.mxu0 0.0
        %1324 = vmatpush1.msra.mxu0 0.0
        %1325 = vmatprep.subr.mxu0 0.0
        %1326 = vmatpush1.msra.mxu0 0.0
        %1327 = vmatprep.subr.mxu0 0.0
        %1328 = vmatpush1.msra.mxu0 0.0
        %1329 = vmatprep.subr.mxu0 0.0
        %1330 = vmatpush1.msra.mxu0 0.0
        %1331 = vmatprep.subr.mxu0 0.0
        %1332 = vmatpush1.msra.mxu0 0.0
        %1333 = vmatprep.subr.mxu0 0.0
        %1334 = vmatpush1.msra.mxu0 0.0
        %1335 = vmatprep.subr.mxu0 0.0
        %1336 = vmatpush1.msra.mxu0 0.0
        %1337 = vmatprep.subr.mxu0 0.0
        %1338 = vmatpush1.msra.mxu0 0.0
        %1339 = vmatprep.subr.mxu0 0.0
        %1340 = vmatpush1.msra.mxu0 0.0
        %1341 = vmatprep.subr.mxu0 0.0
        %1342 = vmatpush1.msra.mxu0 0.0
        %1343 = vmatprep.subr.mxu0 0.0
        %1344 = vmatpush1.msra.mxu0 0.0
        %1345 = vmatprep.subr.mxu0 0.0
        %1346 = vmatpush1.msra.mxu0 0.0
        %1347 = vmatprep.subr.mxu0 0.0
        %1348 = vmatpush1.msra.mxu0 0.0
        %1349 = vmatprep.subr.mxu0 0.0
        %1350 = vmatpush1.msra.mxu0 0.0
        %1351 = vmatprep.subr.mxu0 0.0
        %1352 = vmatpush1.msra.mxu0 0.0
        %1353 = vmatprep.subr.mxu0 0.0
        %1354 = vmatpush1.msra.mxu0 0.0
        %1355 = vmatprep.subr.mxu0 0.0
        %1356 = vmatpush1.msra.mxu0 0.0
        %1357 = vmatprep.subr.mxu0 0.0
        %1358 = vmatpush1.msra.mxu0 0.0
        %1359 = vmatprep.subr.mxu0 0.0
        %1360 = vmatpush1.msra.mxu0 0.0
        %1361 = vmatprep.subr.mxu0 0.0
        %1362 = vmatpush1.msra.mxu0 0.0
        %1363 = vmatprep.subr.mxu0 0.0
        %1364 = vmatpush1.msra.mxu0 0.0
        %1365 = vmatprep.subr.mxu0 0.0
        %1366 = vmatpush1.msra.mxu0 0.0
        %1367 = vmatprep.subr.mxu0 0.0
        %1368 = vmatpush1.msra.mxu0 0.0
        %1369 = vmatprep.subr.mxu0 0.0
        %1370 = vmatpush1.msra.mxu0 0.0
        %1371 = vmatprep.subr.mxu0 0.0
        %1372 = vmatpush1.msra.mxu0 0.0
        %1373 = vmatprep.subr.mxu0 0.0
        %1374 = vmatpush1.msra.mxu0 0.0
        %1375 = vmatprep.subr.mxu0 0.0
        %1376 = vmatpush1.msra.mxu0 0.0
        %1377 = vmatprep.mubr.f32.mxu0 0.0
        %v1378 = vand.u32 %v803, 4294901760
        %1379 = vmatmul.mubr.f32.gmra.mrb[0].mxu0 %v1378
        %v1380 = vpop.f32.mrb[0].mxu0
        %v1381 = vadd.f32 %v1290, %v1380
        %v1382 = vpop.f32.mrb[0].mxu0
        %1383 = vmatprep.mubr.f32.mxu0 0.0
        %v1384 = vand.u32 %v806, 4294901760
        %1385 = vmatmul.mubr.f32.gmra.mrb[0].mxu0 %v1384
        %v1386 = vpop.f32.mrb[0].mxu0
        %v1387 = vadd.f32 %v1296, %v1386
        %v1388 = vpop.f32.mrb[0].mxu0
        %1389 = vmatprep.mubr.f32.mxu0 0.0
        %v1390 = vand.u32 %v809, 4294901760
        %1391 = vmatmul.mubr.f32.gmra.mrb[0].mxu0 %v1390
        %v1392 = vpop.f32.mrb[0].mxu0
        %v1393 = vadd.f32 %v1302, %v1392
        %v1394 = vpop.f32.mrb[0].mxu0
        %1395 = vmatprep.mubr.f32.mxu0 0.0
        %v1396 = vand.u32 %v812, 4294901760
        %1397 = vmatmul.mubr.f32.gmra.mrb[0].mxu0 %v1396
        %v1398 = vpop.f32.mrb[0].mxu0
        %v1399 = vadd.f32 %v1308, %v1398
        %v1400 = vpop.f32.mrb[0].mxu0
        %1401 = vdwg.mxu0
        %1402 = vst [vmem:[%s166] ss:$2 sm:$0xff] %v1381
        %s1403 = scalar_lea.vmem %s166, 16 [#allocation5]
        %1404 = vst [vmem:[%s1403] ss:$2 sm:$0xff] %v1387
        %s1405 = scalar_lea.vmem %s166, 32 [#allocation5]
        %1406 = vst [vmem:[%s1405] ss:$2 sm:$0xff] %v1393
        %s1407 = scalar_lea.vmem %s166, 48 [#allocation5]
        %1408 = vst [vmem:[%s1407] ss:$2 sm:$0xff] %v1399
        %s1409 = scalar_lea.vmem %s148, 64 [#allocation2]
        %v1410 = vld [vmem:[%s1409] sm:$0xff]
        %v1411 = vld [vmem:[%s1409 + $0x8] sm:$0xff]
        %v1412 = vld [vmem:[%s1409 + $0x10] sm:$0xff]
        %v1413 = vld [vmem:[%s1409 + $0x18] sm:$0xff]
        %s1414 = scalar_lea.vmem %s148, 96 [#allocation2]
        %v1415 = vld [vmem:[%s1414] sm:$0xff]
        %v1416 = vld [vmem:[%s1414 + $0x8] sm:$0xff]
        %v1417 = vld [vmem:[%s1414 + $0x10] sm:$0xff]
        %v1418 = vld [vmem:[%s1414 + $0x18] sm:$0xff]
        %v1420 = vsel %vm201, %v1415, 0
        %v1423 = vsel %vm201, %v1416, 0
        %v1426 = vsel %vm201, %v1417, 0
        %v1429 = vsel %vm201, %v1418, 0
        %1431 = vmatprep.subr.mxu0 0.0
        %v1432 = vand.u32 %v190, 4294901760
        %1433 = vmatpush1.msra.mxu0 %v1432
        %1434 = vmatprep.subr.mxu0 0.0
        %v1435 = vand.u32 %v191, 4294901760
        %1436 = vmatpush1.msra.mxu0 %v1435
        %1437 = vmatprep.subr.mxu0 0.0
        %1438 = vmatpush1.msra.mxu0 0.0
        %1439 = vmatprep.subr.mxu0 0.0
        %1440 = vmatpush1.msra.mxu0 0.0
        %1441 = vmatprep.subr.mxu0 0.0
        %1442 = vmatpush1.msra.mxu0 0.0
        %1443 = vmatprep.subr.mxu0 0.0
        %1444 = vmatpush1.msra.mxu0 0.0
        %1445 = vmatprep.subr.mxu0 0.0
        %1446 = vmatpush1.msra.mxu0 0.0
        %1447 = vmatprep.subr.mxu0 0.0
        %1448 = vmatpush1.msra.mxu0 0.0
        %1449 = vmatprep.subr.mxu0 0.0
        %1450 = vmatpush1.msra.mxu0 0.0
        %1451 = vmatprep.subr.mxu0 0.0
        %1452 = vmatpush1.msra.mxu0 0.0
        %1453 = vmatprep.subr.mxu0 0.0
        %1454 = vmatpush1.msra.mxu0 0.0
        %1455 = vmatprep.subr.mxu0 0.0
        %1456 = vmatpush1.msra.mxu0 0.0
        %1457 = vmatprep.subr.mxu0 0.0
        %1458 = vmatpush1.msra.mxu0 0.0
        %1459 = vmatprep.subr.mxu0 0.0
        %1460 = vmatpush1.msra.mxu0 0.0
        %1461 = vmatprep.subr.mxu0 0.0
        %1462 = vmatpush1.msra.mxu0 0.0
        %1463 = vmatprep.subr.mxu0 0.0
        %1464 = vmatpush1.msra.mxu0 0.0
        %1465 = vmatprep.subr.mxu0 0.0
        %1466 = vmatpush1.msra.mxu0 0.0
        %1467 = vmatprep.subr.mxu0 0.0
        %1468 = vmatpush1.msra.mxu0 0.0
        %1469 = vmatprep.subr.mxu0 0.0
        %1470 = vmatpush1.msra.mxu0 0.0
        %1471 = vmatprep.subr.mxu0 0.0
        %1472 = vmatpush1.msra.mxu0 0.0
        %1473 = vmatprep.subr.mxu0 0.0
        %1474 = vmatpush1.msra.mxu0 0.0
        %1475 = vmatprep.subr.mxu0 0.0
        %1476 = vmatpush1.msra.mxu0 0.0
        %1477 = vmatprep.subr.mxu0 0.0
        %1478 = vmatpush1.msra.mxu0 0.0
        %1479 = vmatprep.subr.mxu0 0.0
        %1480 = vmatpush1.msra.mxu0 0.0
        %1481 = vmatprep.subr.mxu0 0.0
        %1482 = vmatpush1.msra.mxu0 0.0
        %1483 = vmatprep.subr.mxu0 0.0
        %1484 = vmatpush1.msra.mxu0 0.0
        %1485 = vmatprep.subr.mxu0 0.0
        %1486 = vmatpush1.msra.mxu0 0.0
        %1487 = vmatprep.subr.mxu0 0.0
        %1488 = vmatpush1.msra.mxu0 0.0
        %1489 = vmatprep.subr.mxu0 0.0
        %1490 = vmatpush1.msra.mxu0 0.0
        %1491 = vmatprep.subr.mxu0 0.0
        %1492 = vmatpush1.msra.mxu0 0.0
        %1493 = vmatprep.subr.mxu0 0.0
        %1494 = vmatpush1.msra.mxu0 0.0
        %1495 = vmatprep.subr.mxu0 0.0
        %1496 = vmatpush1.msra.mxu0 0.0
        %1497 = vmatprep.mubr.f32.mxu0 0.0
        %v1498 = vand.u32 %v1420, 4294901760
        %v1499 = vsub.f32 %v1420, %v1498
        %v1500 = vand.u32 %v1499, 4294901760
        %v1501 = vsub.f32 %v1499, %v1500
        %v1502 = vand.u32 %v1501, 4294901760
        %1503 = vmatmul.mubr.f32.gmra.mrb[0].mxu0 %v1502
        %v1504 = vpop.f32.mrb[0].mxu0
        %v1505 = vadd.f32 0.0, %v1504
        %v1506 = vpop.f32.mrb[0].mxu0
        %1507 = vmatprep.mubr.f32.mxu0 0.0
        %v1508 = vand.u32 %v1423, 4294901760
        %v1509 = vsub.f32 %v1423, %v1508
        %v1510 = vand.u32 %v1509, 4294901760
        %v1511 = vsub.f32 %v1509, %v1510
        %v1512 = vand.u32 %v1511, 4294901760
        %1513 = vmatmul.mubr.f32.gmra.mrb[0].mxu0 %v1512
        %v1514 = vpop.f32.mrb[0].mxu0
        %v1515 = vadd.f32 0.0, %v1514
        %v1516 = vpop.f32.mrb[0].mxu0
        %1517 = vmatprep.mubr.f32.mxu0 0.0
        %v1518 = vand.u32 %v1426, 4294901760
        %v1519 = vsub.f32 %v1426, %v1518
        %v1520 = vand.u32 %v1519, 4294901760
        %v1521 = vsub.f32 %v1519, %v1520
        %v1522 = vand.u32 %v1521, 4294901760
        %1523 = vmatmul.mubr.f32.gmra.mrb[0].mxu0 %v1522
        %v1524 = vpop.f32.mrb[0].mxu0
        %v1525 = vadd.f32 0.0, %v1524
        %v1526 = vpop.f32.mrb[0].mxu0
        %1527 = vmatprep.mubr.f32.mxu0 0.0
        %v1528 = vand.u32 %v1429, 4294901760
        %v1529 = vsub.f32 %v1429, %v1528
        %v1530 = vand.u32 %v1529, 4294901760
        %v1531 = vsub.f32 %v1529, %v1530
        %v1532 = vand.u32 %v1531, 4294901760
        %1533 = vmatmul.mubr.f32.gmra.mrb[0].mxu0 %v1532
        %v1534 = vpop.f32.mrb[0].mxu0
        %v1535 = vadd.f32 0.0, %v1534
        %v1536 = vpop.f32.mrb[0].mxu0
        %1537 = vdwg.mxu0
        %1538 = vmatprep.subr.mxu0 0.0
        %v1539 = vand.u32 %v190, 4294901760
        %v1540 = vsub.f32 %v190, %v1539
        %v1541 = vand.u32 %v1540, 4294901760
        %v1542 = vsub.f32 %v1540, %v1541
        %v1543 = vand.u32 %v1542, 4294901760
        %1544 = vmatpush1.msra.mxu0 %v1543
        %1545 = vmatprep.subr.mxu0 0.0
        %v1546 = vand.u32 %v191, 4294901760
        %v1547 = vsub.f32 %v191, %v1546
        %v1548 = vand.u32 %v1547, 4294901760
        %v1549 = vsub.f32 %v1547, %v1548
        %v1550 = vand.u32 %v1549, 4294901760
        %1551 = vmatpush1.msra.mxu0 %v1550
        %1552 = vmatprep.subr.mxu0 0.0
        %1553 = vmatpush1.msra.mxu0 0.0
        %1554 = vmatprep.subr.mxu0 0.0
        %1555 = vmatpush1.msra.mxu0 0.0
        %1556 = vmatprep.subr.mxu0 0.0
        %1557 = vmatpush1.msra.mxu0 0.0
        %1558 = vmatprep.subr.mxu0 0.0
        %1559 = vmatpush1.msra.mxu0 0.0
        %1560 = vmatprep.subr.mxu0 0.0
        %1561 = vmatpush1.msra.mxu0 0.0
        %1562 = vmatprep.subr.mxu0 0.0
        %1563 = vmatpush1.msra.mxu0 0.0
        %1564 = vmatprep.subr.mxu0 0.0
        %1565 = vmatpush1.msra.mxu0 0.0
        %1566 = vmatprep.subr.mxu0 0.0
        %1567 = vmatpush1.msra.mxu0 0.0
        %1568 = vmatprep.subr.mxu0 0.0
        %1569 = vmatpush1.msra.mxu0 0.0
        %1570 = vmatprep.subr.mxu0 0.0
        %1571 = vmatpush1.msra.mxu0 0.0
        %1572 = vmatprep.subr.mxu0 0.0
        %1573 = vmatpush1.msra.mxu0 0.0
        %1574 = vmatprep.subr.mxu0 0.0
        %1575 = vmatpush1.msra.mxu0 0.0
        %1576 = vmatprep.subr.mxu0 0.0
        %1577 = vmatpush1.msra.mxu0 0.0
        %1578 = vmatprep.subr.mxu0 0.0
        %1579 = vmatpush1.msra.mxu0 0.0
        %1580 = vmatprep.subr.mxu0 0.0
        %1581 = vmatpush1.msra.mxu0 0.0
        %1582 = vmatprep.subr.mxu0 0.0
        %1583 = vmatpush1.msra.mxu0 0.0
        %1584 = vmatprep.subr.mxu0 0.0
        %1585 = vmatpush1.msra.mxu0 0.0
        %1586 = vmatprep.subr.mxu0 0.0
        %1587 = vmatpush1.msra.mxu0 0.0
        %1588 = vmatprep.subr.mxu0 0.0
        %1589 = vmatpush1.msra.mxu0 0.0
        %1590 = vmatprep.subr.mxu0 0.0
        %1591 = vmatpush1.msra.mxu0 0.0
        %1592 = vmatprep.subr.mxu0 0.0
        %1593 = vmatpush1.msra.mxu0 0.0
        %1594 = vmatprep.subr.mxu0 0.0
        %1595 = vmatpush1.msra.mxu0 0.0
        %1596 = vmatprep.subr.mxu0 0.0
        %1597 = vmatpush1.msra.mxu0 0.0
        %1598 = vmatprep.subr.mxu0 0.0
        %1599 = vmatpush1.msra.mxu0 0.0
        %1600 = vmatprep.subr.mxu0 0.0
        %1601 = vmatpush1.msra.mxu0 0.0
        %1602 = vmatprep.subr.mxu0 0.0
        %1603 = vmatpush1.msra.mxu0 0.0
        %1604 = vmatprep.subr.mxu0 0.0
        %1605 = vmatpush1.msra.mxu0 0.0
        %1606 = vmatprep.subr.mxu0 0.0
        %1607 = vmatpush1.msra.mxu0 0.0
        %1608 = vmatprep.subr.mxu0 0.0
        %1609 = vmatpush1.msra.mxu0 0.0
        %1610 = vmatprep.subr.mxu0 0.0
        %1611 = vmatpush1.msra.mxu0 0.0
        %1612 = vmatprep.mubr.f32.mxu0 0.0
        %v1613 = vand.u32 %v1420, 4294901760
        %1614 = vmatmul.mubr.f32.gmra.mrb[0].mxu0 %v1613
        %v1615 = vpop.f32.mrb[0].mxu0
        %v1616 = vadd.f32 %v1505, %v1615
        %v1617 = vpop.f32.mrb[0].mxu0
        %1618 = vmatprep.mubr.f32.mxu0 0.0
        %v1619 = vand.u32 %v1423, 4294901760
        %1620 = vmatmul.mubr.f32.gmra.mrb[0].mxu0 %v1619
        %v1621 = vpop.f32.mrb[0].mxu0
        %v1622 = vadd.f32 %v1515, %v1621
        %v1623 = vpop.f32.mrb[0].mxu0
        %1624 = vmatprep.mubr.f32.mxu0 0.0
        %v1625 = vand.u32 %v1426, 4294901760
        %1626 = vmatmul.mubr.f32.gmra.mrb[0].mxu0 %v1625
        %v1627 = vpop.f32.mrb[0].mxu0
        %v1628 = vadd.f32 %v1525, %v1627
        %v1629 = vpop.f32.mrb[0].mxu0
        %1630 = vmatprep.mubr.f32.mxu0 0.0
        %v1631 = vand.u32 %v1429, 4294901760
        %1632 = vmatmul.mubr.f32.gmra.mrb[0].mxu0 %v1631
        %v1633 = vpop.f32.mrb[0].mxu0
        %v1634 = vadd.f32 %v1535, %v1633
        %v1635 = vpop.f32.mrb[0].mxu0
        %1636 = vdwg.mxu0
        %1637 = vmatprep.subr.mxu0 0.0
        %v1638 = vand.u32 %v190, 4294901760
        %v1639 = vsub.f32 %v190, %v1638
        %1640 = vmatpush1.msra.mxu0 %v1639
        %1641 = vmatprep.subr.mxu0 0.0
        %v1642 = vand.u32 %v191, 4294901760
        %v1643 = vsub.f32 %v191, %v1642
        %1644 = vmatpush1.msra.mxu0 %v1643
        %1645 = vmatprep.subr.mxu0 0.0
        %1646 = vmatpush1.msra.mxu0 0.0
        %1647 = vmatprep.subr.mxu0 0.0
        %1648 = vmatpush1.msra.mxu0 0.0
        %1649 = vmatprep.subr.mxu0 0.0
        %1650 = vmatpush1.msra.mxu0 0.0
        %1651 = vmatprep.subr.mxu0 0.0
        %1652 = vmatpush1.msra.mxu0 0.0
        %1653 = vmatprep.subr.mxu0 0.0
        %1654 = vmatpush1.msra.mxu0 0.0
        %1655 = vmatprep.subr.mxu0 0.0
        %1656 = vmatpush1.msra.mxu0 0.0
        %1657 = vmatprep.subr.mxu0 0.0
        %1658 = vmatpush1.msra.mxu0 0.0
        %1659 = vmatprep.subr.mxu0 0.0
        %1660 = vmatpush1.msra.mxu0 0.0
        %1661 = vmatprep.subr.mxu0 0.0
        %1662 = vmatpush1.msra.mxu0 0.0
        %1663 = vmatprep.subr.mxu0 0.0
        %1664 = vmatpush1.msra.mxu0 0.0
        %1665 = vmatprep.subr.mxu0 0.0
        %1666 = vmatpush1.msra.mxu0 0.0
        %1667 = vmatprep.subr.mxu0 0.0
        %1668 = vmatpush1.msra.mxu0 0.0
        %1669 = vmatprep.subr.mxu0 0.0
        %1670 = vmatpush1.msra.mxu0 0.0
        %1671 = vmatprep.subr.mxu0 0.0
        %1672 = vmatpush1.msra.mxu0 0.0
        %1673 = vmatprep.subr.mxu0 0.0
        %1674 = vmatpush1.msra.mxu0 0.0
        %1675 = vmatprep.subr.mxu0 0.0
        %1676 = vmatpush1.msra.mxu0 0.0
        %1677 = vmatprep.subr.mxu0 0.0
        %1678 = vmatpush1.msra.mxu0 0.0
        %1679 = vmatprep.subr.mxu0 0.0
        %1680 = vmatpush1.msra.mxu0 0.0
        %1681 = vmatprep.subr.mxu0 0.0
        %1682 = vmatpush1.msra.mxu0 0.0
        %1683 = vmatprep.subr.mxu0 0.0
        %1684 = vmatpush1.msra.mxu0 0.0
        %1685 = vmatprep.subr.mxu0 0.0
        %1686 = vmatpush1.msra.mxu0 0.0
        %1687 = vmatprep.subr.mxu0 0.0
        %1688 = vmatpush1.msra.mxu0 0.0
        %1689 = vmatprep.subr.mxu0 0.0
        %1690 = vmatpush1.msra.mxu0 0.0
        %1691 = vmatprep.subr.mxu0 0.0
        %1692 = vmatpush1.msra.mxu0 0.0
        %1693 = vmatprep.subr.mxu0 0.0
        %1694 = vmatpush1.msra.mxu0 0.0
        %1695 = vmatprep.subr.mxu0 0.0
        %1696 = vmatpush1.msra.mxu0 0.0
        %1697 = vmatprep.subr.mxu0 0.0
        %1698 = vmatpush1.msra.mxu0 0.0
        %1699 = vmatprep.subr.mxu0 0.0
        %1700 = vmatpush1.msra.mxu0 0.0
        %1701 = vmatprep.subr.mxu0 0.0
        %1702 = vmatpush1.msra.mxu0 0.0
        %1703 = vmatprep.subr.mxu0 0.0
        %1704 = vmatpush1.msra.mxu0 0.0
        %1705 = vmatprep.mubr.f32.mxu0 0.0
        %v1706 = vand.u32 %v1420, 4294901760
        %v1707 = vsub.f32 %v1420, %v1706
        %1708 = vmatmul.mubr.f32.gmra.mrb[0].mxu0 %v1707
        %v1709 = vpop.f32.mrb[0].mxu0
        %v1710 = vadd.f32 %v1616, %v1709
        %v1711 = vpop.f32.mrb[0].mxu0
        %1712 = vmatprep.mubr.f32.mxu0 0.0
        %v1713 = vand.u32 %v1423, 4294901760
        %v1714 = vsub.f32 %v1423, %v1713
        %1715 = vmatmul.mubr.f32.gmra.mrb[0].mxu0 %v1714
        %v1716 = vpop.f32.mrb[0].mxu0
        %v1717 = vadd.f32 %v1622, %v1716
        %v1718 = vpop.f32.mrb[0].mxu0
        %1719 = vmatprep.mubr.f32.mxu0 0.0
        %v1720 = vand.u32 %v1426, 4294901760
        %v1721 = vsub.f32 %v1426, %v1720
        %1722 = vmatmul.mubr.f32.gmra.mrb[0].mxu0 %v1721
        %v1723 = vpop.f32.mrb[0].mxu0
        %v1724 = vadd.f32 %v1628, %v1723
        %v1725 = vpop.f32.mrb[0].mxu0
        %1726 = vmatprep.mubr.f32.mxu0 0.0
        %v1727 = vand.u32 %v1429, 4294901760
        %v1728 = vsub.f32 %v1429, %v1727
        %1729 = vmatmul.mubr.f32.gmra.mrb[0].mxu0 %v1728
        %v1730 = vpop.f32.mrb[0].mxu0
        %v1731 = vadd.f32 %v1634, %v1730
        %v1732 = vpop.f32.mrb[0].mxu0
        %1733 = vdwg.mxu0
        %1734 = vmatprep.subr.mxu0 0.0
        %v1735 = vand.u32 %v190, 4294901760
        %1736 = vmatpush1.msra.mxu0 %v1735
        %1737 = vmatprep.subr.mxu0 0.0
        %v1738 = vand.u32 %v191, 4294901760
        %1739 = vmatpush1.msra.mxu0 %v1738
        %1740 = vmatprep.subr.mxu0 0.0
        %1741 = vmatpush1.msra.mxu0 0.0
        %1742 = vmatprep.subr.mxu0 0.0
        %1743 = vmatpush1.msra.mxu0 0.0
        %1744 = vmatprep.subr.mxu0 0.0
        %1745 = vmatpush1.msra.mxu0 0.0
        %1746 = vmatprep.subr.mxu0 0.0
        %1747 = vmatpush1.msra.mxu0 0.0
        %1748 = vmatprep.subr.mxu0 0.0
        %1749 = vmatpush1.msra.mxu0 0.0
        %1750 = vmatprep.subr.mxu0 0.0
        %1751 = vmatpush1.msra.mxu0 0.0
        %1752 = vmatprep.subr.mxu0 0.0
        %1753 = vmatpush1.msra.mxu0 0.0
        %1754 = vmatprep.subr.mxu0 0.0
        %1755 = vmatpush1.msra.mxu0 0.0
        %1756 = vmatprep.subr.mxu0 0.0
        %1757 = vmatpush1.msra.mxu0 0.0
        %1758 = vmatprep.subr.mxu0 0.0
        %1759 = vmatpush1.msra.mxu0 0.0
        %1760 = vmatprep.subr.mxu0 0.0
        %1761 = vmatpush1.msra.mxu0 0.0
        %1762 = vmatprep.subr.mxu0 0.0
        %1763 = vmatpush1.msra.mxu0 0.0
        %1764 = vmatprep.subr.mxu0 0.0
        %1765 = vmatpush1.msra.mxu0 0.0
        %1766 = vmatprep.subr.mxu0 0.0
        %1767 = vmatpush1.msra.mxu0 0.0
        %1768 = vmatprep.subr.mxu0 0.0
        %1769 = vmatpush1.msra.mxu0 0.0
        %1770 = vmatprep.subr.mxu0 0.0
        %1771 = vmatpush1.msra.mxu0 0.0
        %1772 = vmatprep.subr.mxu0 0.0
        %1773 = vmatpush1.msra.mxu0 0.0
        %1774 = vmatprep.subr.mxu0 0.0
        %1775 = vmatpush1.msra.mxu0 0.0
        %1776 = vmatprep.subr.mxu0 0.0
        %1777 = vmatpush1.msra.mxu0 0.0
        %1778 = vmatprep.subr.mxu0 0.0
        %1779 = vmatpush1.msra.mxu0 0.0
        %1780 = vmatprep.subr.mxu0 0.0
        %1781 = vmatpush1.msra.mxu0 0.0
        %1782 = vmatprep.subr.mxu0 0.0
        %1783 = vmatpush1.msra.mxu0 0.0
        %1784 = vmatprep.subr.mxu0 0.0
        %1785 = vmatpush1.msra.mxu0 0.0
        %1786 = vmatprep.subr.mxu0 0.0
        %1787 = vmatpush1.msra.mxu0 0.0
        %1788 = vmatprep.subr.mxu0 0.0
        %1789 = vmatpush1.msra.mxu0 0.0
        %1790 = vmatprep.subr.mxu0 0.0
        %1791 = vmatpush1.msra.mxu0 0.0
        %1792 = vmatprep.subr.mxu0 0.0
        %1793 = vmatpush1.msra.mxu0 0.0
        %1794 = vmatprep.subr.mxu0 0.0
        %1795 = vmatpush1.msra.mxu0 0.0
        %1796 = vmatprep.subr.mxu0 0.0
        %1797 = vmatpush1.msra.mxu0 0.0
        %1798 = vmatprep.subr.mxu0 0.0
        %1799 = vmatpush1.msra.mxu0 0.0
        %1800 = vmatprep.mubr.f32.mxu0 0.0
        %v1801 = vand.u32 %v1420, 4294901760
        %v1802 = vsub.f32 %v1420, %v1801
        %v1803 = vand.u32 %v1802, 4294901760
        %1804 = vmatmul.mubr.f32.gmra.mrb[0].mxu0 %v1803
        %v1805 = vpop.f32.mrb[0].mxu0
        %v1806 = vadd.f32 %v1710, %v1805
        %v1807 = vpop.f32.mrb[0].mxu0
        %1808 = vmatprep.mubr.f32.mxu0 0.0
        %v1809 = vand.u32 %v1423, 4294901760
        %v1810 = vsub.f32 %v1423, %v1809
        %v1811 = vand.u32 %v1810, 4294901760
        %1812 = vmatmul.mubr.f32.gmra.mrb[0].mxu0 %v1811
        %v1813 = vpop.f32.mrb[0].mxu0
        %v1814 = vadd.f32 %v1717, %v1813
        %v1815 = vpop.f32.mrb[0].mxu0
        %1816 = vmatprep.mubr.f32.mxu0 0.0
        %v1817 = vand.u32 %v1426, 4294901760
        %v1818 = vsub.f32 %v1426, %v1817
        %v1819 = vand.u32 %v1818, 4294901760
        %1820 = vmatmul.mubr.f32.gmra.mrb[0].mxu0 %v1819
        %v1821 = vpop.f32.mrb[0].mxu0
        %v1822 = vadd.f32 %v1724, %v1821
        %v1823 = vpop.f32.mrb[0].mxu0
        %1824 = vmatprep.mubr.f32.mxu0 0.0
        %v1825 = vand.u32 %v1429, 4294901760
        %v1826 = vsub.f32 %v1429, %v1825
        %v1827 = vand.u32 %v1826, 4294901760
        %1828 = vmatmul.mubr.f32.gmra.mrb[0].mxu0 %v1827
        %v1829 = vpop.f32.mrb[0].mxu0
        %v1830 = vadd.f32 %v1731, %v1829
        %v1831 = vpop.f32.mrb[0].mxu0
        %1832 = vdwg.mxu0
        %1833 = vmatprep.subr.mxu0 0.0
        %v1834 = vand.u32 %v190, 4294901760
        %v1835 = vsub.f32 %v190, %v1834
        %v1836 = vand.u32 %v1835, 4294901760
        %1837 = vmatpush1.msra.mxu0 %v1836
        %1838 = vmatprep.subr.mxu0 0.0
        %v1839 = vand.u32 %v191, 4294901760
        %v1840 = vsub.f32 %v191, %v1839
        %v1841 = vand.u32 %v1840, 4294901760
        %1842 = vmatpush1.msra.mxu0 %v1841
        %1843 = vmatprep.subr.mxu0 0.0
        %1844 = vmatpush1.msra.mxu0 0.0
        %1845 = vmatprep.subr.mxu0 0.0
        %1846 = vmatpush1.msra.mxu0 0.0
        %1847 = vmatprep.subr.mxu0 0.0
        %1848 = vmatpush1.msra.mxu0 0.0
        %1849 = vmatprep.subr.mxu0 0.0
        %1850 = vmatpush1.msra.mxu0 0.0
        %1851 = vmatprep.subr.mxu0 0.0
        %1852 = vmatpush1.msra.mxu0 0.0
        %1853 = vmatprep.subr.mxu0 0.0
        %1854 = vmatpush1.msra.mxu0 0.0
        %1855 = vmatprep.subr.mxu0 0.0
        %1856 = vmatpush1.msra.mxu0 0.0
        %1857 = vmatprep.subr.mxu0 0.0
        %1858 = vmatpush1.msra.mxu0 0.0
        %1859 = vmatprep.subr.mxu0 0.0
        %1860 = vmatpush1.msra.mxu0 0.0
        %1861 = vmatprep.subr.mxu0 0.0
        %1862 = vmatpush1.msra.mxu0 0.0
        %1863 = vmatprep.subr.mxu0 0.0
        %1864 = vmatpush1.msra.mxu0 0.0
        %1865 = vmatprep.subr.mxu0 0.0
        %1866 = vmatpush1.msra.mxu0 0.0
        %1867 = vmatprep.subr.mxu0 0.0
        %1868 = vmatpush1.msra.mxu0 0.0
        %1869 = vmatprep.subr.mxu0 0.0
        %1870 = vmatpush1.msra.mxu0 0.0
        %1871 = vmatprep.subr.mxu0 0.0
        %1872 = vmatpush1.msra.mxu0 0.0
        %1873 = vmatprep.subr.mxu0 0.0
        %1874 = vmatpush1.msra.mxu0 0.0
        %1875 = vmatprep.subr.mxu0 0.0
        %1876 = vmatpush1.msra.mxu0 0.0
        %1877 = vmatprep.subr.mxu0 0.0
        %1878 = vmatpush1.msra.mxu0 0.0
        %1879 = vmatprep.subr.mxu0 0.0
        %1880 = vmatpush1.msra.mxu0 0.0
        %1881 = vmatprep.subr.mxu0 0.0
        %1882 = vmatpush1.msra.mxu0 0.0
        %1883 = vmatprep.subr.mxu0 0.0
        %1884 = vmatpush1.msra.mxu0 0.0
        %1885 = vmatprep.subr.mxu0 0.0
        %1886 = vmatpush1.msra.mxu0 0.0
        %1887 = vmatprep.subr.mxu0 0.0
        %1888 = vmatpush1.msra.mxu0 0.0
        %1889 = vmatprep.subr.mxu0 0.0
        %1890 = vmatpush1.msra.mxu0 0.0
        %1891 = vmatprep.subr.mxu0 0.0
        %1892 = vmatpush1.msra.mxu0 0.0
        %1893 = vmatprep.subr.mxu0 0.0
        %1894 = vmatpush1.msra.mxu0 0.0
        %1895 = vmatprep.subr.mxu0 0.0
        %1896 = vmatpush1.msra.mxu0 0.0
        %1897 = vmatprep.subr.mxu0 0.0
        %1898 = vmatpush1.msra.mxu0 0.0
        %1899 = vmatprep.subr.mxu0 0.0
        %1900 = vmatpush1.msra.mxu0 0.0
        %1901 = vmatprep.subr.mxu0 0.0
        %1902 = vmatpush1.msra.mxu0 0.0
        %1903 = vmatprep.mubr.f32.mxu0 0.0
        %v1904 = vand.u32 %v1420, 4294901760
        %1905 = vmatmul.mubr.f32.gmra.mrb[0].mxu0 %v1904
        %v1906 = vpop.f32.mrb[0].mxu0
        %v1907 = vadd.f32 %v1806, %v1906
        %v1908 = vpop.f32.mrb[0].mxu0
        %1909 = vmatprep.mubr.f32.mxu0 0.0
        %v1910 = vand.u32 %v1423, 4294901760
        %1911 = vmatmul.mubr.f32.gmra.mrb[0].mxu0 %v1910
        %v1912 = vpop.f32.mrb[0].mxu0
        %v1913 = vadd.f32 %v1814, %v1912
        %v1914 = vpop.f32.mrb[0].mxu0
        %1915 = vmatprep.mubr.f32.mxu0 0.0
        %v1916 = vand.u32 %v1426, 4294901760
        %1917 = vmatmul.mubr.f32.gmra.mrb[0].mxu0 %v1916
        %v1918 = vpop.f32.mrb[0].mxu0
        %v1919 = vadd.f32 %v1822, %v1918
        %v1920 = vpop.f32.mrb[0].mxu0
        %1921 = vmatprep.mubr.f32.mxu0 0.0
        %v1922 = vand.u32 %v1429, 4294901760
        %1923 = vmatmul.mubr.f32.gmra.mrb[0].mxu0 %v1922
        %v1924 = vpop.f32.mrb[0].mxu0
        %v1925 = vadd.f32 %v1830, %v1924
        %v1926 = vpop.f32.mrb[0].mxu0
        %1927 = vdwg.mxu0
        %1928 = vmatprep.subr.mxu0 0.0
        %v1929 = vand.u32 %v190, 4294901760
        %1930 = vmatpush1.msra.mxu0 %v1929
        %1931 = vmatprep.subr.mxu0 0.0
        %v1932 = vand.u32 %v191, 4294901760
        %1933 = vmatpush1.msra.mxu0 %v1932
        %1934 = vmatprep.subr.mxu0 0.0
        %1935 = vmatpush1.msra.mxu0 0.0
        %1936 = vmatprep.subr.mxu0 0.0
        %1937 = vmatpush1.msra.mxu0 0.0
        %1938 = vmatprep.subr.mxu0 0.0
        %1939 = vmatpush1.msra.mxu0 0.0
        %1940 = vmatprep.subr.mxu0 0.0
        %1941 = vmatpush1.msra.mxu0 0.0
        %1942 = vmatprep.subr.mxu0 0.0
        %1943 = vmatpush1.msra.mxu0 0.0
        %1944 = vmatprep.subr.mxu0 0.0
        %1945 = vmatpush1.msra.mxu0 0.0
        %1946 = vmatprep.subr.mxu0 0.0
        %1947 = vmatpush1.msra.mxu0 0.0
        %1948 = vmatprep.subr.mxu0 0.0
        %1949 = vmatpush1.msra.mxu0 0.0
        %1950 = vmatprep.subr.mxu0 0.0
        %1951 = vmatpush1.msra.mxu0 0.0
        %1952 = vmatprep.subr.mxu0 0.0
        %1953 = vmatpush1.msra.mxu0 0.0
        %1954 = vmatprep.subr.mxu0 0.0
        %1955 = vmatpush1.msra.mxu0 0.0
        %1956 = vmatprep.subr.mxu0 0.0
        %1957 = vmatpush1.msra.mxu0 0.0
        %1958 = vmatprep.subr.mxu0 0.0
        %1959 = vmatpush1.msra.mxu0 0.0
        %1960 = vmatprep.subr.mxu0 0.0
        %1961 = vmatpush1.msra.mxu0 0.0
        %1962 = vmatprep.subr.mxu0 0.0
        %1963 = vmatpush1.msra.mxu0 0.0
        %1964 = vmatprep.subr.mxu0 0.0
        %1965 = vmatpush1.msra.mxu0 0.0
        %1966 = vmatprep.subr.mxu0 0.0
        %1967 = vmatpush1.msra.mxu0 0.0
        %1968 = vmatprep.subr.mxu0 0.0
        %1969 = vmatpush1.msra.mxu0 0.0
        %1970 = vmatprep.subr.mxu0 0.0
        %1971 = vmatpush1.msra.mxu0 0.0
        %1972 = vmatprep.subr.mxu0 0.0
        %1973 = vmatpush1.msra.mxu0 0.0
        %1974 = vmatprep.subr.mxu0 0.0
        %1975 = vmatpush1.msra.mxu0 0.0
        %1976 = vmatprep.subr.mxu0 0.0
        %1977 = vmatpush1.msra.mxu0 0.0
        %1978 = vmatprep.subr.mxu0 0.0
        %1979 = vmatpush1.msra.mxu0 0.0
        %1980 = vmatprep.subr.mxu0 0.0
        %1981 = vmatpush1.msra.mxu0 0.0
        %1982 = vmatprep.subr.mxu0 0.0
        %1983 = vmatpush1.msra.mxu0 0.0
        %1984 = vmatprep.subr.mxu0 0.0
        %1985 = vmatpush1.msra.mxu0 0.0
        %1986 = vmatprep.subr.mxu0 0.0
        %1987 = vmatpush1.msra.mxu0 0.0
        %1988 = vmatprep.subr.mxu0 0.0
        %1989 = vmatpush1.msra.mxu0 0.0
        %1990 = vmatprep.subr.mxu0 0.0
        %1991 = vmatpush1.msra.mxu0 0.0
        %1992 = vmatprep.subr.mxu0 0.0
        %1993 = vmatpush1.msra.mxu0 0.0
        %1994 = vmatprep.mubr.f32.mxu0 0.0
        %v1995 = vand.u32 %v1420, 4294901760
        %1996 = vmatmul.mubr.f32.gmra.mrb[0].mxu0 %v1995
        %v1997 = vpop.f32.mrb[0].mxu0
        %v1998 = vadd.f32 %v1907, %v1997
        %v1999 = vpop.f32.mrb[0].mxu0
        %2000 = vmatprep.mubr.f32.mxu0 0.0
        %v2001 = vand.u32 %v1423, 4294901760
        %2002 = vmatmul.mubr.f32.gmra.mrb[0].mxu0 %v2001
        %v2003 = vpop.f32.mrb[0].mxu0
        %v2004 = vadd.f32 %v1913, %v2003
        %v2005 = vpop.f32.mrb[0].mxu0
        %2006 = vmatprep.mubr.f32.mxu0 0.0
        %v2007 = vand.u32 %v1426, 4294901760
        %2008 = vmatmul.mubr.f32.gmra.mrb[0].mxu0 %v2007
        %v2009 = vpop.f32.mrb[0].mxu0
        %v2010 = vadd.f32 %v1919, %v2009
        %v2011 = vpop.f32.mrb[0].mxu0
        %2012 = vmatprep.mubr.f32.mxu0 0.0
        %v2013 = vand.u32 %v1429, 4294901760
        %2014 = vmatmul.mubr.f32.gmra.mrb[0].mxu0 %v2013
        %v2015 = vpop.f32.mrb[0].mxu0
        %v2016 = vadd.f32 %v1925, %v2015
        %v2017 = vpop.f32.mrb[0].mxu0
        %2018 = vdwg.mxu0
        %v2020 = vsel %vm201, %v1410, 0
        %v2023 = vsel %vm201, %v1411, 0
        %v2026 = vsel %vm201, %v1412, 0
        %v2029 = vsel %vm201, %v1413, 0
        %2031 = vmatprep.subr.mxu0 0.0
        %v2032 = vand.u32 %v182, 4294901760
        %2033 = vmatpush1.msra.mxu0 %v2032
        %2034 = vmatprep.subr.mxu0 0.0
        %v2035 = vand.u32 %v183, 4294901760
        %2036 = vmatpush1.msra.mxu0 %v2035
        %2037 = vmatprep.subr.mxu0 0.0
        %2038 = vmatpush1.msra.mxu0 0.0
        %2039 = vmatprep.subr.mxu0 0.0
        %2040 = vmatpush1.msra.mxu0 0.0
        %2041 = vmatprep.subr.mxu0 0.0
        %2042 = vmatpush1.msra.mxu0 0.0
        %2043 = vmatprep.subr.mxu0 0.0
        %2044 = vmatpush1.msra.mxu0 0.0
        %2045 = vmatprep.subr.mxu0 0.0
        %2046 = vmatpush1.msra.mxu0 0.0
        %2047 = vmatprep.subr.mxu0 0.0
        %2048 = vmatpush1.msra.mxu0 0.0
        %2049 = vmatprep.subr.mxu0 0.0
        %2050 = vmatpush1.msra.mxu0 0.0
        %2051 = vmatprep.subr.mxu0 0.0
        %2052 = vmatpush1.msra.mxu0 0.0
        %2053 = vmatprep.subr.mxu0 0.0
        %2054 = vmatpush1.msra.mxu0 0.0
        %2055 = vmatprep.subr.mxu0 0.0
        %2056 = vmatpush1.msra.mxu0 0.0
        %2057 = vmatprep.subr.mxu0 0.0
        %2058 = vmatpush1.msra.mxu0 0.0
        %2059 = vmatprep.subr.mxu0 0.0
        %2060 = vmatpush1.msra.mxu0 0.0
        %2061 = vmatprep.subr.mxu0 0.0
        %2062 = vmatpush1.msra.mxu0 0.0
        %2063 = vmatprep.subr.mxu0 0.0
        %2064 = vmatpush1.msra.mxu0 0.0
        %2065 = vmatprep.subr.mxu0 0.0
        %2066 = vmatpush1.msra.mxu0 0.0
        %2067 = vmatprep.subr.mxu0 0.0
        %2068 = vmatpush1.msra.mxu0 0.0
        %2069 = vmatprep.subr.mxu0 0.0
        %2070 = vmatpush1.msra.mxu0 0.0
        %2071 = vmatprep.subr.mxu0 0.0
        %2072 = vmatpush1.msra.mxu0 0.0
        %2073 = vmatprep.subr.mxu0 0.0
        %2074 = vmatpush1.msra.mxu0 0.0
        %2075 = vmatprep.subr.mxu0 0.0
        %2076 = vmatpush1.msra.mxu0 0.0
        %2077 = vmatprep.subr.mxu0 0.0
        %2078 = vmatpush1.msra.mxu0 0.0
        %2079 = vmatprep.subr.mxu0 0.0
        %2080 = vmatpush1.msra.mxu0 0.0
        %2081 = vmatprep.subr.mxu0 0.0
        %2082 = vmatpush1.msra.mxu0 0.0
        %2083 = vmatprep.subr.mxu0 0.0
        %2084 = vmatpush1.msra.mxu0 0.0
        %2085 = vmatprep.subr.mxu0 0.0
        %2086 = vmatpush1.msra.mxu0 0.0
        %2087 = vmatprep.subr.mxu0 0.0
        %2088 = vmatpush1.msra.mxu0 0.0
        %2089 = vmatprep.subr.mxu0 0.0
        %2090 = vmatpush1.msra.mxu0 0.0
        %2091 = vmatprep.subr.mxu0 0.0
        %2092 = vmatpush1.msra.mxu0 0.0
        %2093 = vmatprep.subr.mxu0 0.0
        %2094 = vmatpush1.msra.mxu0 0.0
        %2095 = vmatprep.subr.mxu0 0.0
        %2096 = vmatpush1.msra.mxu0 0.0
        %2097 = vmatprep.mubr.f32.mxu0 0.0
        %v2098 = vand.u32 %v2020, 4294901760
        %v2099 = vsub.f32 %v2020, %v2098
        %v2100 = vand.u32 %v2099, 4294901760
        %v2101 = vsub.f32 %v2099, %v2100
        %v2102 = vand.u32 %v2101, 4294901760
        %2103 = vmatmul.mubr.f32.gmra.mrb[0].mxu0 %v2102
        %v2104 = vpop.f32.mrb[0].mxu0
        %v2105 = vadd.f32 %v1998, %v2104
        %v2106 = vpop.f32.mrb[0].mxu0
        %2107 = vmatprep.mubr.f32.mxu0 0.0
        %v2108 = vand.u32 %v2023, 4294901760
        %v2109 = vsub.f32 %v2023, %v2108
        %v2110 = vand.u32 %v2109, 4294901760
        %v2111 = vsub.f32 %v2109, %v2110
        %v2112 = vand.u32 %v2111, 4294901760
        %2113 = vmatmul.mubr.f32.gmra.mrb[0].mxu0 %v2112
        %v2114 = vpop.f32.mrb[0].mxu0
        %v2115 = vadd.f32 %v2004, %v2114
        %v2116 = vpop.f32.mrb[0].mxu0
        %2117 = vmatprep.mubr.f32.mxu0 0.0
        %v2118 = vand.u32 %v2026, 4294901760
        %v2119 = vsub.f32 %v2026, %v2118
        %v2120 = vand.u32 %v2119, 4294901760
        %v2121 = vsub.f32 %v2119, %v2120
        %v2122 = vand.u32 %v2121, 4294901760
        %2123 = vmatmul.mubr.f32.gmra.mrb[0].mxu0 %v2122
        %v2124 = vpop.f32.mrb[0].mxu0
        %v2125 = vadd.f32 %v2010, %v2124
        %v2126 = vpop.f32.mrb[0].mxu0
        %2127 = vmatprep.mubr.f32.mxu0 0.0
        %v2128 = vand.u32 %v2029, 4294901760
        %v2129 = vsub.f32 %v2029, %v2128
        %v2130 = vand.u32 %v2129, 4294901760
        %v2131 = vsub.f32 %v2129, %v2130
        %v2132 = vand.u32 %v2131, 4294901760
        %2133 = vmatmul.mubr.f32.gmra.mrb[0].mxu0 %v2132
        %v2134 = vpop.f32.mrb[0].mxu0
        %v2135 = vadd.f32 %v2016, %v2134
        %v2136 = vpop.f32.mrb[0].mxu0
        %2137 = vdwg.mxu0
        %2138 = vmatprep.subr.mxu0 0.0
        %v2139 = vand.u32 %v182, 4294901760
        %v2140 = vsub.f32 %v182, %v2139
        %v2141 = vand.u32 %v2140, 4294901760
        %v2142 = vsub.f32 %v2140, %v2141
        %v2143 = vand.u32 %v2142, 4294901760
        %2144 = vmatpush1.msra.mxu0 %v2143
        %2145 = vmatprep.subr.mxu0 0.0
        %v2146 = vand.u32 %v183, 4294901760
        %v2147 = vsub.f32 %v183, %v2146
        %v2148 = vand.u32 %v2147, 4294901760
        %v2149 = vsub.f32 %v2147, %v2148
        %v2150 = vand.u32 %v2149, 4294901760
        %2151 = vmatpush1.msra.mxu0 %v2150
        %2152 = vmatprep.subr.mxu0 0.0
        %2153 = vmatpush1.msra.mxu0 0.0
        %2154 = vmatprep.subr.mxu0 0.0
        %2155 = vmatpush1.msra.mxu0 0.0
        %2156 = vmatprep.subr.mxu0 0.0
        %2157 = vmatpush1.msra.mxu0 0.0
        %2158 = vmatprep.subr.mxu0 0.0
        %2159 = vmatpush1.msra.mxu0 0.0
        %2160 = vmatprep.subr.mxu0 0.0
        %2161 = vmatpush1.msra.mxu0 0.0
        %2162 = vmatprep.subr.mxu0 0.0
        %2163 = vmatpush1.msra.mxu0 0.0
        %2164 = vmatprep.subr.mxu0 0.0
        %2165 = vmatpush1.msra.mxu0 0.0
        %2166 = vmatprep.subr.mxu0 0.0
        %2167 = vmatpush1.msra.mxu0 0.0
        %2168 = vmatprep.subr.mxu0 0.0
        %2169 = vmatpush1.msra.mxu0 0.0
        %2170 = vmatprep.subr.mxu0 0.0
        %2171 = vmatpush1.msra.mxu0 0.0
        %2172 = vmatprep.subr.mxu0 0.0
        %2173 = vmatpush1.msra.mxu0 0.0
        %2174 = vmatprep.subr.mxu0 0.0
        %2175 = vmatpush1.msra.mxu0 0.0
        %2176 = vmatprep.subr.mxu0 0.0
        %2177 = vmatpush1.msra.mxu0 0.0
        %2178 = vmatprep.subr.mxu0 0.0
        %2179 = vmatpush1.msra.mxu0 0.0
        %2180 = vmatprep.subr.mxu0 0.0
        %2181 = vmatpush1.msra.mxu0 0.0
        %2182 = vmatprep.subr.mxu0 0.0
        %2183 = vmatpush1.msra.mxu0 0.0
        %2184 = vmatprep.subr.mxu0 0.0
        %2185 = vmatpush1.msra.mxu0 0.0
        %2186 = vmatprep.subr.mxu0 0.0
        %2187 = vmatpush1.msra.mxu0 0.0
        %2188 = vmatprep.subr.mxu0 0.0
        %2189 = vmatpush1.msra.mxu0 0.0
        %2190 = vmatprep.subr.mxu0 0.0
        %2191 = vmatpush1.msra.mxu0 0.0
        %2192 = vmatprep.subr.mxu0 0.0
        %2193 = vmatpush1.msra.mxu0 0.0
        %2194 = vmatprep.subr.mxu0 0.0
        %2195 = vmatpush1.msra.mxu0 0.0
        %2196 = vmatprep.subr.mxu0 0.0
        %2197 = vmatpush1.msra.mxu0 0.0
        %2198 = vmatprep.subr.mxu0 0.0
        %2199 = vmatpush1.msra.mxu0 0.0
        %2200 = vmatprep.subr.mxu0 0.0
        %2201 = vmatpush1.msra.mxu0 0.0
        %2202 = vmatprep.subr.mxu0 0.0
        %2203 = vmatpush1.msra.mxu0 0.0
        %2204 = vmatprep.subr.mxu0 0.0
        %2205 = vmatpush1.msra.mxu0 0.0
        %2206 = vmatprep.subr.mxu0 0.0
        %2207 = vmatpush1.msra.mxu0 0.0
        %2208 = vmatprep.subr.mxu0 0.0
        %2209 = vmatpush1.msra.mxu0 0.0
        %2210 = vmatprep.subr.mxu0 0.0
        %2211 = vmatpush1.msra.mxu0 0.0
        %2212 = vmatprep.mubr.f32.mxu0 0.0
        %v2213 = vand.u32 %v2020, 4294901760
        %2214 = vmatmul.mubr.f32.gmra.mrb[0].mxu0 %v2213
        %v2215 = vpop.f32.mrb[0].mxu0
        %v2216 = vadd.f32 %v2105, %v2215
        %v2217 = vpop.f32.mrb[0].mxu0
        %2218 = vmatprep.mubr.f32.mxu0 0.0
        %v2219 = vand.u32 %v2023, 4294901760
        %2220 = vmatmul.mubr.f32.gmra.mrb[0].mxu0 %v2219
        %v2221 = vpop.f32.mrb[0].mxu0
        %v2222 = vadd.f32 %v2115, %v2221
        %v2223 = vpop.f32.mrb[0].mxu0
        %2224 = vmatprep.mubr.f32.mxu0 0.0
        %v2225 = vand.u32 %v2026, 4294901760
        %2226 = vmatmul.mubr.f32.gmra.mrb[0].mxu0 %v2225
        %v2227 = vpop.f32.mrb[0].mxu0
        %v2228 = vadd.f32 %v2125, %v2227
        %v2229 = vpop.f32.mrb[0].mxu0
        %2230 = vmatprep.mubr.f32.mxu0 0.0
        %v2231 = vand.u32 %v2029, 4294901760
        %2232 = vmatmul.mubr.f32.gmra.mrb[0].mxu0 %v2231
        %v2233 = vpop.f32.mrb[0].mxu0
        %v2234 = vadd.f32 %v2135, %v2233
        %v2235 = vpop.f32.mrb[0].mxu0
        %2236 = vdwg.mxu0
        %2237 = vmatprep.subr.mxu0 0.0
        %v2238 = vand.u32 %v182, 4294901760
        %v2239 = vsub.f32 %v182, %v2238
        %2240 = vmatpush1.msra.mxu0 %v2239
        %2241 = vmatprep.subr.mxu0 0.0
        %v2242 = vand.u32 %v183, 4294901760
        %v2243 = vsub.f32 %v183, %v2242
        %2244 = vmatpush1.msra.mxu0 %v2243
        %2245 = vmatprep.subr.mxu0 0.0
        %2246 = vmatpush1.msra.mxu0 0.0
        %2247 = vmatprep.subr.mxu0 0.0
        %2248 = vmatpush1.msra.mxu0 0.0
        %2249 = vmatprep.subr.mxu0 0.0
        %2250 = vmatpush1.msra.mxu0 0.0
        %2251 = vmatprep.subr.mxu0 0.0
        %2252 = vmatpush1.msra.mxu0 0.0
        %2253 = vmatprep.subr.mxu0 0.0
        %2254 = vmatpush1.msra.mxu0 0.0
        %2255 = vmatprep.subr.mxu0 0.0
        %2256 = vmatpush1.msra.mxu0 0.0
        %2257 = vmatprep.subr.mxu0 0.0
        %2258 = vmatpush1.msra.mxu0 0.0
        %2259 = vmatprep.subr.mxu0 0.0
        %2260 = vmatpush1.msra.mxu0 0.0
        %2261 = vmatprep.subr.mxu0 0.0
        %2262 = vmatpush1.msra.mxu0 0.0
        %2263 = vmatprep.subr.mxu0 0.0
        %2264 = vmatpush1.msra.mxu0 0.0
        %2265 = vmatprep.subr.mxu0 0.0
        %2266 = vmatpush1.msra.mxu0 0.0
        %2267 = vmatprep.subr.mxu0 0.0
        %2268 = vmatpush1.msra.mxu0 0.0
        %2269 = vmatprep.subr.mxu0 0.0
        %2270 = vmatpush1.msra.mxu0 0.0
        %2271 = vmatprep.subr.mxu0 0.0
        %2272 = vmatpush1.msra.mxu0 0.0
        %2273 = vmatprep.subr.mxu0 0.0
        %2274 = vmatpush1.msra.mxu0 0.0
        %2275 = vmatprep.subr.mxu0 0.0
        %2276 = vmatpush1.msra.mxu0 0.0
        %2277 = vmatprep.subr.mxu0 0.0
        %2278 = vmatpush1.msra.mxu0 0.0
        %2279 = vmatprep.subr.mxu0 0.0
        %2280 = vmatpush1.msra.mxu0 0.0
        %2281 = vmatprep.subr.mxu0 0.0
        %2282 = vmatpush1.msra.mxu0 0.0
        %2283 = vmatprep.subr.mxu0 0.0
        %2284 = vmatpush1.msra.mxu0 0.0
        %2285 = vmatprep.subr.mxu0 0.0
        %2286 = vmatpush1.msra.mxu0 0.0
        %2287 = vmatprep.subr.mxu0 0.0
        %2288 = vmatpush1.msra.mxu0 0.0
        %2289 = vmatprep.subr.mxu0 0.0
        %2290 = vmatpush1.msra.mxu0 0.0
        %2291 = vmatprep.subr.mxu0 0.0
        %2292 = vmatpush1.msra.mxu0 0.0
        %2293 = vmatprep.subr.mxu0 0.0
        %2294 = vmatpush1.msra.mxu0 0.0
        %2295 = vmatprep.subr.mxu0 0.0
        %2296 = vmatpush1.msra.mxu0 0.0
        %2297 = vmatprep.subr.mxu0 0.0
        %2298 = vmatpush1.msra.mxu0 0.0
        %2299 = vmatprep.subr.mxu0 0.0
        %2300 = vmatpush1.msra.mxu0 0.0
        %2301 = vmatprep.subr.mxu0 0.0
        %2302 = vmatpush1.msra.mxu0 0.0
        %2303 = vmatprep.subr.mxu0 0.0
        %2304 = vmatpush1.msra.mxu0 0.0
        %2305 = vmatprep.mubr.f32.mxu0 0.0
        %v2306 = vand.u32 %v2020, 4294901760
        %v2307 = vsub.f32 %v2020, %v2306
        %2308 = vmatmul.mubr.f32.gmra.mrb[0].mxu0 %v2307
        %v2309 = vpop.f32.mrb[0].mxu0
        %v2310 = vadd.f32 %v2216, %v2309
        %v2311 = vpop.f32.mrb[0].mxu0
        %2312 = vmatprep.mubr.f32.mxu0 0.0
        %v2313 = vand.u32 %v2023, 4294901760
        %v2314 = vsub.f32 %v2023, %v2313
        %2315 = vmatmul.mubr.f32.gmra.mrb[0].mxu0 %v2314
        %v2316 = vpop.f32.mrb[0].mxu0
        %v2317 = vadd.f32 %v2222, %v2316
        %v2318 = vpop.f32.mrb[0].mxu0
        %2319 = vmatprep.mubr.f32.mxu0 0.0
        %v2320 = vand.u32 %v2026, 4294901760
        %v2321 = vsub.f32 %v2026, %v2320
        %2322 = vmatmul.mubr.f32.gmra.mrb[0].mxu0 %v2321
        %v2323 = vpop.f32.mrb[0].mxu0
        %v2324 = vadd.f32 %v2228, %v2323
        %v2325 = vpop.f32.mrb[0].mxu0
        %2326 = vmatprep.mubr.f32.mxu0 0.0
        %v2327 = vand.u32 %v2029, 4294901760
        %v2328 = vsub.f32 %v2029, %v2327
        %2329 = vmatmul.mubr.f32.gmra.mrb[0].mxu0 %v2328
        %v2330 = vpop.f32.mrb[0].mxu0
        %v2331 = vadd.f32 %v2234, %v2330
        %v2332 = vpop.f32.mrb[0].mxu0
        %2333 = vdwg.mxu0
        %2334 = vmatprep.subr.mxu0 0.0
        %v2335 = vand.u32 %v182, 4294901760
        %2336 = vmatpush1.msra.mxu0 %v2335
        %2337 = vmatprep.subr.mxu0 0.0
        %v2338 = vand.u32 %v183, 4294901760
        %2339 = vmatpush1.msra.mxu0 %v2338
        %2340 = vmatprep.subr.mxu0 0.0
        %2341 = vmatpush1.msra.mxu0 0.0
        %2342 = vmatprep.subr.mxu0 0.0
        %2343 = vmatpush1.msra.mxu0 0.0
        %2344 = vmatprep.subr.mxu0 0.0
        %2345 = vmatpush1.msra.mxu0 0.0
        %2346 = vmatprep.subr.mxu0 0.0
        %2347 = vmatpush1.msra.mxu0 0.0
        %2348 = vmatprep.subr.mxu0 0.0
        %2349 = vmatpush1.msra.mxu0 0.0
        %2350 = vmatprep.subr.mxu0 0.0
        %2351 = vmatpush1.msra.mxu0 0.0
        %2352 = vmatprep.subr.mxu0 0.0
        %2353 = vmatpush1.msra.mxu0 0.0
        %2354 = vmatprep.subr.mxu0 0.0
        %2355 = vmatpush1.msra.mxu0 0.0
        %2356 = vmatprep.subr.mxu0 0.0
        %2357 = vmatpush1.msra.mxu0 0.0
        %2358 = vmatprep.subr.mxu0 0.0
        %2359 = vmatpush1.msra.mxu0 0.0
        %2360 = vmatprep.subr.mxu0 0.0
        %2361 = vmatpush1.msra.mxu0 0.0
        %2362 = vmatprep.subr.mxu0 0.0
        %2363 = vmatpush1.msra.mxu0 0.0
        %2364 = vmatprep.subr.mxu0 0.0
        %2365 = vmatpush1.msra.mxu0 0.0
        %2366 = vmatprep.subr.mxu0 0.0
        %2367 = vmatpush1.msra.mxu0 0.0
        %2368 = vmatprep.subr.mxu0 0.0
        %2369 = vmatpush1.msra.mxu0 0.0
        %2370 = vmatprep.subr.mxu0 0.0
        %2371 = vmatpush1.msra.mxu0 0.0
        %2372 = vmatprep.subr.mxu0 0.0
        %2373 = vmatpush1.msra.mxu0 0.0
        %2374 = vmatprep.subr.mxu0 0.0
        %2375 = vmatpush1.msra.mxu0 0.0
        %2376 = vmatprep.subr.mxu0 0.0
        %2377 = vmatpush1.msra.mxu0 0.0
        %2378 = vmatprep.subr.mxu0 0.0
        %2379 = vmatpush1.msra.mxu0 0.0
        %2380 = vmatprep.subr.mxu0 0.0
        %2381 = vmatpush1.msra.mxu0 0.0
        %2382 = vmatprep.subr.mxu0 0.0
        %2383 = vmatpush1.msra.mxu0 0.0
        %2384 = vmatprep.subr.mxu0 0.0
        %2385 = vmatpush1.msra.mxu0 0.0
        %2386 = vmatprep.subr.mxu0 0.0
        %2387 = vmatpush1.msra.mxu0 0.0
        %2388 = vmatprep.subr.mxu0 0.0
        %2389 = vmatpush1.msra.mxu0 0.0
        %2390 = vmatprep.subr.mxu0 0.0
        %2391 = vmatpush1.msra.mxu0 0.0
        %2392 = vmatprep.subr.mxu0 0.0
        %2393 = vmatpush1.msra.mxu0 0.0
        %2394 = vmatprep.subr.mxu0 0.0
        %2395 = vmatpush1.msra.mxu0 0.0
        %2396 = vmatprep.subr.mxu0 0.0
        %2397 = vmatpush1.msra.mxu0 0.0
        %2398 = vmatprep.subr.mxu0 0.0
        %2399 = vmatpush1.msra.mxu0 0.0
        %2400 = vmatprep.mubr.f32.mxu0 0.0
        %v2401 = vand.u32 %v2020, 4294901760
        %v2402 = vsub.f32 %v2020, %v2401
        %v2403 = vand.u32 %v2402, 4294901760
        %2404 = vmatmul.mubr.f32.gmra.mrb[0].mxu0 %v2403
        %v2405 = vpop.f32.mrb[0].mxu0
        %v2406 = vadd.f32 %v2310, %v2405
        %v2407 = vpop.f32.mrb[0].mxu0
        %2408 = vmatprep.mubr.f32.mxu0 0.0
        %v2409 = vand.u32 %v2023, 4294901760
        %v2410 = vsub.f32 %v2023, %v2409
        %v2411 = vand.u32 %v2410, 4294901760
        %2412 = vmatmul.mubr.f32.gmra.mrb[0].mxu0 %v2411
        %v2413 = vpop.f32.mrb[0].mxu0
        %v2414 = vadd.f32 %v2317, %v2413
        %v2415 = vpop.f32.mrb[0].mxu0
        %2416 = vmatprep.mubr.f32.mxu0 0.0
        %v2417 = vand.u32 %v2026, 4294901760
        %v2418 = vsub.f32 %v2026, %v2417
        %v2419 = vand.u32 %v2418, 4294901760
        %2420 = vmatmul.mubr.f32.gmra.mrb[0].mxu0 %v2419
        %v2421 = vpop.f32.mrb[0].mxu0
        %v2422 = vadd.f32 %v2324, %v2421
        %v2423 = vpop.f32.mrb[0].mxu0
        %2424 = vmatprep.mubr.f32.mxu0 0.0
        %v2425 = vand.u32 %v2029, 4294901760
        %v2426 = vsub.f32 %v2029, %v2425
        %v2427 = vand.u32 %v2426, 4294901760
        %2428 = vmatmul.mubr.f32.gmra.mrb[0].mxu0 %v2427
        %v2429 = vpop.f32.mrb[0].mxu0
        %v2430 = vadd.f32 %v2331, %v2429
        %v2431 = vpop.f32.mrb[0].mxu0
        %2432 = vdwg.mxu0
        %2433 = vmatprep.subr.mxu0 0.0
        %v2434 = vand.u32 %v182, 4294901760
        %v2435 = vsub.f32 %v182, %v2434
        %v2436 = vand.u32 %v2435, 4294901760
        %2437 = vmatpush1.msra.mxu0 %v2436
        %2438 = vmatprep.subr.mxu0 0.0
        %v2439 = vand.u32 %v183, 4294901760
        %v2440 = vsub.f32 %v183, %v2439
        %v2441 = vand.u32 %v2440, 4294901760
        %2442 = vmatpush1.msra.mxu0 %v2441
        %2443 = vmatprep.subr.mxu0 0.0
        %2444 = vmatpush1.msra.mxu0 0.0
        %2445 = vmatprep.subr.mxu0 0.0
        %2446 = vmatpush1.msra.mxu0 0.0
        %2447 = vmatprep.subr.mxu0 0.0
        %2448 = vmatpush1.msra.mxu0 0.0
        %2449 = vmatprep.subr.mxu0 0.0
        %2450 = vmatpush1.msra.mxu0 0.0
        %2451 = vmatprep.subr.mxu0 0.0
        %2452 = vmatpush1.msra.mxu0 0.0
        %2453 = vmatprep.subr.mxu0 0.0
        %2454 = vmatpush1.msra.mxu0 0.0
        %2455 = vmatprep.subr.mxu0 0.0
        %2456 = vmatpush1.msra.mxu0 0.0
        %2457 = vmatprep.subr.mxu0 0.0
        %2458 = vmatpush1.msra.mxu0 0.0
        %2459 = vmatprep.subr.mxu0 0.0
        %2460 = vmatpush1.msra.mxu0 0.0
        %2461 = vmatprep.subr.mxu0 0.0
        %2462 = vmatpush1.msra.mxu0 0.0
        %2463 = vmatprep.subr.mxu0 0.0
        %2464 = vmatpush1.msra.mxu0 0.0
        %2465 = vmatprep.subr.mxu0 0.0
        %2466 = vmatpush1.msra.mxu0 0.0
        %2467 = vmatprep.subr.mxu0 0.0
        %2468 = vmatpush1.msra.mxu0 0.0
        %2469 = vmatprep.subr.mxu0 0.0
        %2470 = vmatpush1.msra.mxu0 0.0
        %2471 = vmatprep.subr.mxu0 0.0
        %2472 = vmatpush1.msra.mxu0 0.0
        %2473 = vmatprep.subr.mxu0 0.0
        %2474 = vmatpush1.msra.mxu0 0.0
        %2475 = vmatprep.subr.mxu0 0.0
        %2476 = vmatpush1.msra.mxu0 0.0
        %2477 = vmatprep.subr.mxu0 0.0
        %2478 = vmatpush1.msra.mxu0 0.0
        %2479 = vmatprep.subr.mxu0 0.0
        %2480 = vmatpush1.msra.mxu0 0.0
        %2481 = vmatprep.subr.mxu0 0.0
        %2482 = vmatpush1.msra.mxu0 0.0
        %2483 = vmatprep.subr.mxu0 0.0
        %2484 = vmatpush1.msra.mxu0 0.0
        %2485 = vmatprep.subr.mxu0 0.0
        %2486 = vmatpush1.msra.mxu0 0.0
        %2487 = vmatprep.subr.mxu0 0.0
        %2488 = vmatpush1.msra.mxu0 0.0
        %2489 = vmatprep.subr.mxu0 0.0
        %2490 = vmatpush1.msra.mxu0 0.0
        %2491 = vmatprep.subr.mxu0 0.0
        %2492 = vmatpush1.msra.mxu0 0.0
        %2493 = vmatprep.subr.mxu0 0.0
        %2494 = vmatpush1.msra.mxu0 0.0
        %2495 = vmatprep.subr.mxu0 0.0
        %2496 = vmatpush1.msra.mxu0 0.0
        %2497 = vmatprep.subr.mxu0 0.0
        %2498 = vmatpush1.msra.mxu0 0.0
        %2499 = vmatprep.subr.mxu0 0.0
        %2500 = vmatpush1.msra.mxu0 0.0
        %2501 = vmatprep.subr.mxu0 0.0
        %2502 = vmatpush1.msra.mxu0 0.0
        %2503 = vmatprep.mubr.f32.mxu0 0.0
        %v2504 = vand.u32 %v2020, 4294901760
        %2505 = vmatmul.mubr.f32.gmra.mrb[0].mxu0 %v2504
        %v2506 = vpop.f32.mrb[0].mxu0
        %v2507 = vadd.f32 %v2406, %v2506
        %v2508 = vpop.f32.mrb[0].mxu0
        %2509 = vmatprep.mubr.f32.mxu0 0.0
        %v2510 = vand.u32 %v2023, 4294901760
        %2511 = vmatmul.mubr.f32.gmra.mrb[0].mxu0 %v2510
        %v2512 = vpop.f32.mrb[0].mxu0
        %v2513 = vadd.f32 %v2414, %v2512
        %v2514 = vpop.f32.mrb[0].mxu0
        %2515 = vmatprep.mubr.f32.mxu0 0.0
        %v2516 = vand.u32 %v2026, 4294901760
        %2517 = vmatmul.mubr.f32.gmra.mrb[0].mxu0 %v2516
        %v2518 = vpop.f32.mrb[0].mxu0
        %v2519 = vadd.f32 %v2422, %v2518
        %v2520 = vpop.f32.mrb[0].mxu0
        %2521 = vmatprep.mubr.f32.mxu0 0.0
        %v2522 = vand.u32 %v2029, 4294901760
        %2523 = vmatmul.mubr.f32.gmra.mrb[0].mxu0 %v2522
        %v2524 = vpop.f32.mrb[0].mxu0
        %v2525 = vadd.f32 %v2430, %v2524
        %v2526 = vpop.f32.mrb[0].mxu0
        %2527 = vdwg.mxu0
        %2528 = vmatprep.subr.mxu0 0.0
        %v2529 = vand.u32 %v182, 4294901760
        %2530 = vmatpush1.msra.mxu0 %v2529
        %2531 = vmatprep.subr.mxu0 0.0
        %v2532 = vand.u32 %v183, 4294901760
        %2533 = vmatpush1.msra.mxu0 %v2532
        %2534 = vmatprep.subr.mxu0 0.0
        %2535 = vmatpush1.msra.mxu0 0.0
        %2536 = vmatprep.subr.mxu0 0.0
        %2537 = vmatpush1.msra.mxu0 0.0
        %2538 = vmatprep.subr.mxu0 0.0
        %2539 = vmatpush1.msra.mxu0 0.0
        %2540 = vmatprep.subr.mxu0 0.0
        %2541 = vmatpush1.msra.mxu0 0.0
        %2542 = vmatprep.subr.mxu0 0.0
        %2543 = vmatpush1.msra.mxu0 0.0
        %2544 = vmatprep.subr.mxu0 0.0
        %2545 = vmatpush1.msra.mxu0 0.0
        %2546 = vmatprep.subr.mxu0 0.0
        %2547 = vmatpush1.msra.mxu0 0.0
        %2548 = vmatprep.subr.mxu0 0.0
        %2549 = vmatpush1.msra.mxu0 0.0
        %2550 = vmatprep.subr.mxu0 0.0
        %2551 = vmatpush1.msra.mxu0 0.0
        %2552 = vmatprep.subr.mxu0 0.0
        %2553 = vmatpush1.msra.mxu0 0.0
        %2554 = vmatprep.subr.mxu0 0.0
        %2555 = vmatpush1.msra.mxu0 0.0
        %2556 = vmatprep.subr.mxu0 0.0
        %2557 = vmatpush1.msra.mxu0 0.0
        %2558 = vmatprep.subr.mxu0 0.0
        %2559 = vmatpush1.msra.mxu0 0.0
        %2560 = vmatprep.subr.mxu0 0.0
        %2561 = vmatpush1.msra.mxu0 0.0
        %2562 = vmatprep.subr.mxu0 0.0
        %2563 = vmatpush1.msra.mxu0 0.0
        %2564 = vmatprep.subr.mxu0 0.0
        %2565 = vmatpush1.msra.mxu0 0.0
        %2566 = vmatprep.subr.mxu0 0.0
        %2567 = vmatpush1.msra.mxu0 0.0
        %2568 = vmatprep.subr.mxu0 0.0
        %2569 = vmatpush1.msra.mxu0 0.0
        %2570 = vmatprep.subr.mxu0 0.0
        %2571 = vmatpush1.msra.mxu0 0.0
        %2572 = vmatprep.subr.mxu0 0.0
        %2573 = vmatpush1.msra.mxu0 0.0
        %2574 = vmatprep.subr.mxu0 0.0
        %2575 = vmatpush1.msra.mxu0 0.0
        %2576 = vmatprep.subr.mxu0 0.0
        %2577 = vmatpush1.msra.mxu0 0.0
        %2578 = vmatprep.subr.mxu0 0.0
        %2579 = vmatpush1.msra.mxu0 0.0
        %2580 = vmatprep.subr.mxu0 0.0
        %2581 = vmatpush1.msra.mxu0 0.0
        %2582 = vmatprep.subr.mxu0 0.0
        %2583 = vmatpush1.msra.mxu0 0.0
        %2584 = vmatprep.subr.mxu0 0.0
        %2585 = vmatpush1.msra.mxu0 0.0
        %2586 = vmatprep.subr.mxu0 0.0
        %2587 = vmatpush1.msra.mxu0 0.0
        %2588 = vmatprep.subr.mxu0 0.0
        %2589 = vmatpush1.msra.mxu0 0.0
        %2590 = vmatprep.subr.mxu0 0.0
        %2591 = vmatpush1.msra.mxu0 0.0
        %2592 = vmatprep.subr.mxu0 0.0
        %2593 = vmatpush1.msra.mxu0 0.0
        %2594 = vmatprep.mubr.f32.mxu0 0.0
        %v2595 = vand.u32 %v2020, 4294901760
        %2596 = vmatmul.mubr.f32.gmra.mrb[0].mxu0 %v2595
        %v2597 = vpop.f32.mrb[0].mxu0
        %v2598 = vadd.f32 %v2507, %v2597
        %v2599 = vpop.f32.mrb[0].mxu0
        %2600 = vmatprep.mubr.f32.mxu0 0.0
        %v2601 = vand.u32 %v2023, 4294901760
        %2602 = vmatmul.mubr.f32.gmra.mrb[0].mxu0 %v2601
        %v2603 = vpop.f32.mrb[0].mxu0
        %v2604 = vadd.f32 %v2513, %v2603
        %v2605 = vpop.f32.mrb[0].mxu0
        %2606 = vmatprep.mubr.f32.mxu0 0.0
        %v2607 = vand.u32 %v2026, 4294901760
        %2608 = vmatmul.mubr.f32.gmra.mrb[0].mxu0 %v2607
        %v2609 = vpop.f32.mrb[0].mxu0
        %v2610 = vadd.f32 %v2519, %v2609
        %v2611 = vpop.f32.mrb[0].mxu0
        %2612 = vmatprep.mubr.f32.mxu0 0.0
        %v2613 = vand.u32 %v2029, 4294901760
        %2614 = vmatmul.mubr.f32.gmra.mrb[0].mxu0 %v2613
        %v2615 = vpop.f32.mrb[0].mxu0
        %v2616 = vadd.f32 %v2525, %v2615
        %v2617 = vpop.f32.mrb[0].mxu0
        %2618 = vdwg.mxu0
        %s2619 = scalar_lea.vmem %s166, 1 [#allocation5]
        %2620 = vst [vmem:[%s2619] ss:$2 sm:$0xff] %v2598
        %s2621 = scalar_lea.vmem %s166, 17 [#allocation5]
        %2622 = vst [vmem:[%s2621] ss:$2 sm:$0xff] %v2604
        %s2623 = scalar_lea.vmem %s166, 33 [#allocation5]
        %2624 = vst [vmem:[%s2623] ss:$2 sm:$0xff] %v2610
        %s2625 = scalar_lea.vmem %s166, 49 [#allocation5]
        %2626 = vst [vmem:[%s2625] ss:$2 sm:$0xff] %v2616
        %s2627 = sand.u32 %s79, 1
        %s2628 = scalar_lea.sflag [#allocation4], %s2627
        %s2629 = sand.u32 %s79, 1
        %s2630 = smul.addr %s2629, 64
        %s2631 = scalar_lea.vmem [#allocation5], %s2630
        // Predicated region
        $region29: #{tpu_custom_call.1} parent=23 // pred_check
          %p2632 = pneg %p89
        $region30: #{tpu_custom_call.1} parent=23 // pred_check_branch
          %2634 = sbr.rel (%p2632) target = $region32
        $region31: #{tpu_custom_call.1} parent=23 // pred_region
          %s2635 = smul.u32 2, %s24
          %s2636 = smul.u32 4, %s25
          %s2638 = ssub.s32 1024, 1024
          %2639 = vsyncadd %s2628, %s2638
          %s2640 = smul.addr %s2635, 4
          %s2641 = sadd.s32 %s2636, %s2640
          %s2642 = smul.addr %s23, 8
          %s2643 = sadd.s32 %s2641, %s2642
          %s2644 = smul.addr %s2643, 128
          %s2645 = scalar_lea.hbm %s1, %s2644
          %s2646 = sshll.u32 %s2631, 4
          %s2647 = int_to_ptr.vmem [resolvable:$true] %s2646
          %2652 = dma.vmem_to_hbm [thread:$0]  %s2647, 1024, %s2645, %s2628, 128, 128, 8
        $region32: #{tpu_custom_call.1} parent=23 // pred_fallthru
          _
      $region24: #{tpu_custom_call.1} parent=5 // pred_fallthru
        _
      %p2653 = scmp.le.s32.totalorder 2, %s13
      // Predicated region
      $region33: #{tpu_custom_call.1} parent=5 // pred_check
        %p2654 = pneg %p2653
      $region34: #{tpu_custom_call.1} parent=5 // pred_check_branch
        %2656 = sbr.rel (%p2654) target = $region36
      $region35: #{tpu_custom_call.1} parent=5 // pred_region
        %s2657 = ssub.s32 %s13, 2
        // Predicated region
        $region37: #{tpu_custom_call.1} parent=35 // pred_check
          %p2658 = pneg %p95
        $region38: #{tpu_custom_call.1} parent=35 // pred_check_branch
          %2660 = sbr.rel (%p2658) target = $region40
        $region39: #{tpu_custom_call.1} parent=35 // pred_region
          %s2661 = sand.u32 %s80, 1
          %s2662 = scalar_lea.sflag [#allocation4], %s2661
          %s2663 = sand.u32 %s80, 1
          %s2664 = smul.addr %s2663, 64
          %s2665 = scalar_lea.vmem [#allocation5], %s2664
          %2666 = dma.done %s2662, 1024
        $region40: #{tpu_custom_call.1} parent=35 // pred_fallthru
          _
      $region36: #{tpu_custom_call.1} parent=5 // pred_fallthru
        _
    $region6: #{tpu_custom_call.1} parent=1 // loop_footer
      %s17 = sadd.s32 1, %s13
    $region7: #{tpu_custom_call.1} parent=1 // loop_footer_branch
      %12 = sbr.rel target = $region3
    $region8: #{tpu_custom_call.1} parent=1 // loop_exit
      _
    %2667 = vsyncpa [#allocation3], 1
    %s2668 = scalar_lea.sflag [#allocation3], 1
    %2669 = vsyncpa %s2668, 1
    %2670 = vsyncpa [#allocation4], 1
    %s2671 = scalar_lea.sflag [#allocation4], 1
    %2672 = vsyncpa %s2671, 1

</llo_original>
